<compile_context>
chip_gen: v5e
topology: v5e:2x2
jax: 0.10.0
libtpu: 0.0.40
codegen_flags: <defaults>
</compile_context>

<pallas_src>
import functools

import jax
import jax.numpy as jnp
import numpy as np
from jax.experimental import pallas as pl
from jax.experimental.pallas import tpu as pltpu

_BN_EPS = 1e-5
_LEAKY_SLOPE = 0.01
# MXU operand dtype for conv1/conv2 (accumulation is always f32).  Set to
# jnp.float32 for bit-exact f32 (PyTorch-like) numerics.
_MM_DTYPE = jnp.bfloat16
_NUM_PHASES = 4          # tiled path: stats(L1) -> stats(L2) -> stats(L3) -> write
_MAX_SHIFT = 3           # largest |row shift| across all layers (K=7 -> +/-3)


# ----------------------------------------------------------------------------
# In-kernel helpers (shared by both kernels)
# ----------------------------------------------------------------------------
def _shift_mask(a, shift, masks_ref):
    """out[r, :] = a[r + shift, :] if the shifted row stays inside the same
    sample, else 0.  One XLU roll + ONE broadcasted (rows,1) multiply."""
    if shift == 0:
        return a
    rows = a.shape[0]
    rolled = pltpu.roll(a, shift=(-shift) % rows, axis=0)
    col = shift + _MAX_SHIFT
    return rolled * masks_ref[:, col:col + 1]


def _gabor_stage(x_ref, masks_ref, w0_ref):
    """GaborConv1d(1->32, K=7, pad=3) as 7 VPU FMAs (contraction depth 7 is far
    too small for the MXU)."""
    kk, c_out = w0_ref.shape
    rows = x_ref.shape[0]
    xb = jnp.broadcast_to(x_ref[...], (rows, c_out))       # hoisted broadcast
    y = None
    for k in range(kk):
        term = _shift_mask(xb, k - kk // 2, masks_ref) * w0_ref[k:k + 1, :]
        y = term if y is None else y + term
    return y


def _conv_stage(a, masks_ref, w_ref, kk):
    """Conv1d(C_in->C_out, K=kk, pad=kk//2) as ONE MXU matmul: lane-concatenate
    the kk shifted/masked bf16 copies -> (rows, kk*C_in) and multiply by the
    tap-major (kk*C_in, C_out) weight (f32 accumulation)."""
    pieces = [
        _shift_mask(a, k - kk // 2, masks_ref).astype(w_ref.dtype)
        for k in range(kk)
    ]
    cat = jnp.concatenate(pieces, axis=1)
    return jnp.dot(cat, w_ref[...], preferred_element_type=jnp.float32)


def _leaky(y):
    return jnp.maximum(y, _LEAKY_SLOPE * y)


# ----------------------------------------------------------------------------
# Single-tile kernel (whole problem fits one VMEM block): one pass, no phases.
# ----------------------------------------------------------------------------
def _bn_leaky_block(y):
    """Train-mode BatchNorm over the whole (rows, C) block (gamma=1, beta=0)
    + leaky_relu.  Two-pass variance (sum of squared deviations)."""
    inv = 1.0 / y.shape[0]
    mean = jnp.sum(y, axis=0, keepdims=True) * inv
    d = y - mean
    var = jnp.sum(d * d, axis=0, keepdims=True) * inv
    return _leaky(d * jax.lax.rsqrt(var + _BN_EPS))


def _single_block_kernel(x_ref, masks_ref, w0_ref, w1_ref, w2_ref, o_ref):
    a1 = _bn_leaky_block(_gabor_stage(x_ref, masks_ref, w0_ref))
    a2 = _bn_leaky_block(_conv_stage(a1, masks_ref, w1_ref, 5))
    o_ref[...] = _bn_leaky_block(_conv_stage(a2, masks_ref, w2_ref, 3))


# ----------------------------------------------------------------------------
# Tiled kernel: grid = (phase, row_tile), both "arbitrary" (sequential).
# ----------------------------------------------------------------------------
def _accum_stats(s_ref, y, tile_idx, tile_rows):
    """Chan/Welford combine of this tile's per-channel (mean, M2) into the
    running stats held in s_ref (row 0 = mean, row 1 = M2)."""
    n_b = float(tile_rows)
    n_a = tile_idx.astype(jnp.float32) * n_b
    n = n_a + n_b
    m_b = jnp.sum(y, axis=0, keepdims=True) * (1.0 / n_b)
    d = y - m_b
    m2_b = jnp.sum(d * d, axis=0, keepdims=True)
    mean_a = s_ref[0:1, :]
    delta = m_b - mean_a
    s_ref[0:1, :] = mean_a + delta * (n_b / n)
    s_ref[1:2, :] = s_ref[1:2, :] + m2_b + delta * delta * (n_a * (n_b / n))


def _norm_leaky(y, s_ref, rows_total):
    """Normalize with the finished global stats: one (1,C) rsqrt, then a single
    full-width mul+add, then leaky_relu."""
    mean = s_ref[0:1, :]
    var = s_ref[1:2, :] * (1.0 / rows_total)
    scale = jax.lax.rsqrt(var + _BN_EPS)
    offset = -mean * scale
    return _leaky(y * scale + offset)


def _tiled_kernel(x_ref, masks_ref, w0_ref, w1_ref, w2_ref, o_ref,
                  s1_ref, s2_ref, s3_ref, *, rows_total):
    p = pl.program_id(0)          # phase (outer / slow axis)
    t = pl.program_id(1)          # row tile (inner / fast axis)
    tile_rows = x_ref.shape[0]

    @pl.when((p == 0) & (t == 0))
    def _():
        s1_ref[...] = jnp.zeros_like(s1_ref)
        s2_ref[...] = jnp.zeros_like(s2_ref)
        s3_ref[...] = jnp.zeros_like(s3_ref)

    # Layer 1 (cheap VPU conv) is recomputed every phase; layers 2/3 only in
    # the phases that need them (recompute beats spilling a1/a2 to HBM).
    y1 = _gabor_stage(x_ref, masks_ref, w0_ref)

    @pl.when(p == 0)
    def _():
        _accum_stats(s1_ref, y1, t, tile_rows)

    @pl.when(p >= 1)
    def _():
        a1 = _norm_leaky(y1, s1_ref, rows_total)
        y2 = _conv_stage(a1, masks_ref, w1_ref, 5)

        @pl.when(p == 1)
        def _():
            _accum_stats(s2_ref, y2, t, tile_rows)

        @pl.when(p >= 2)
        def _():
            a2 = _norm_leaky(y2, s2_ref, rows_total)
            y3 = _conv_stage(a2, masks_ref, w2_ref, 3)

            @pl.when(p == 2)
            def _():
                _accum_stats(s3_ref, y3, t, tile_rows)

            @pl.when(p == _NUM_PHASES - 1)
            def _():
                o_ref[...] = _norm_leaky(y3, s3_ref, rows_total)


# ----------------------------------------------------------------------------
# Wrapper
# ----------------------------------------------------------------------------
def _flatten_conv_weight_tap_major(w, mm_dtype):
    # PyTorch Conv1d weight (C_out, C_in, K) -> (K*C_in, C_out), tap-major:
    # rows [k*C_in:(k+1)*C_in] = W_k with W_k[ci, co] = w[co, ci, k].
    c_out, c_in, k = w.shape
    return jnp.transpose(w, (2, 1, 0)).reshape(k * c_in, c_out).astype(mm_dtype)


def _shift_mask_table(tile_rows, sample_len):
    """(tile_rows, 8) f32: column (s + 3) is 1.0 where a row shift of s stays
    inside the same length-`sample_len` sample.  Tiles hold whole samples, so
    one table serves every tile."""
    pos = jnp.arange(tile_rows, dtype=jnp.int32) % sample_len
    cols = [((pos + s >= 0) & (pos + s < sample_len)).astype(jnp.float32)
            for s in range(-_MAX_SHIFT, _MAX_SHIFT + 1)]
    cols.append(jnp.ones((tile_rows,), jnp.float32))       # pad to 8 lanes
    return jnp.stack(cols, axis=1)


def _pick_samples_per_tile(n, sample_len, target_rows):
    """Largest divisor d of n with d*sample_len a multiple of 8 and not above
    the target (whole samples per tile, sublane aligned).  Falls back to a
    single tile (block == full array, so no alignment constraint)."""
    best = None
    for d in range(1, n + 1):
        if n % d:
            continue
        rows = d * sample_len
        if rows % 8 or rows > max(target_rows, sample_len):
            continue
        best = d
    return best if best is not None else n


@functools.partial(jax.jit, static_argnames=("ncl_output", "target_tile_rows"))
def gabor_nn1d_forward(params, x, *, ncl_output=True, target_tile_rows=2048):
    """x: (N, 1, L) f32 -> (N, 128, L) f32 (PyTorch NCL layout).
    ncl_output=False returns the lane-dense (N, L, 128) layout and skips the
    output transpose (about half the output-side HBM traffic)."""
    n, c_in, l = x.shape
    assert c_in == 1
    rows = n * l

    # (N, 1, L) -> (N*L, 1): rows ordered (n, l), channels on the lane axis.
    x2d = x.astype(jnp.float32).reshape(rows, 1)
    w0 = jnp.transpose(params["g0_w"][:, 0, :], (1, 0)).astype(jnp.float32)  # (7, 32)
    w1 = _flatten_conv_weight_tap_major(params["c1_w"], _MM_DTYPE)           # (160, 64)
    w2 = _flatten_conv_weight_tap_major(params["c2_w"], _MM_DTYPE)           # (192, 128)

    spt = _pick_samples_per_tile(n, l, target_tile_rows)
    tile_rows = spt * l
    num_tiles = rows // tile_rows
    masks = _shift_mask_table(tile_rows, l)

    # Advisory cost estimate (tiled path recomputes layer1 x4, layer2 x3, layer3 x2).
    rc = (4, 3, 2) if num_tiles > 1 else (1, 1, 1)
    flops = rows * (rc[0] * 2 * 7 * 32 + rc[1] * 2 * 160 * 64 + rc[2] * 2 * 192 * 128)
    bytes_accessed = (rows * (4 * rc[0] + 128 * 4)
                      + 4 * (w0.size + masks.size) + 2 * (w1.size + w2.size))
    cost = pl.CostEstimate(flops=int(flops), transcendentals=0,
                           bytes_accessed=int(bytes_accessed))

    # VMEM budget from the actual per-tile buffers (+ headroom); stays below
    # every generation's physical VMEM.
    vmem_limit = int(min(max(8 * 1024 * tile_rows, 32 * 2**20), 56 * 2**20))

    if num_tiles == 1:
        cp = pltpu.CompilerParams(vmem_limit_bytes=vmem_limit)
        vmem = pl.BlockSpec(memory_space=pltpu.MemorySpace.VMEM)
        out2d = pl.pallas_call(
            _single_block_kernel,
            out_shape=jax.ShapeDtypeStruct((rows, 128), jnp.float32),
            in_specs=[vmem] * 5,
            out_specs=vmem,
            compiler_params=cp,
            cost_estimate=cost,
        )(x2d, masks, w0, w1, w2)
    else:
        cp = pltpu.CompilerParams(
            dimension_semantics=("arbitrary", "arbitrary"),
            vmem_limit_bytes=vmem_limit)
        grid_spec = pltpu.PrefetchScalarGridSpec(
            num_scalar_prefetch=0,
            grid=(_NUM_PHASES, num_tiles),
            in_specs=[
                pl.BlockSpec((tile_rows, 1), lambda p, t: (t, 0)),
                # Constant index maps: mask table and weights are fetched once
                # and stay VMEM-resident across the whole grid.
                pl.BlockSpec((tile_rows, 8), lambda p, t: (0, 0)),
                pl.BlockSpec((7, 32), lambda p, t: (0, 0)),
                pl.BlockSpec((5 * 32, 64), lambda p, t: (0, 0)),
                pl.BlockSpec((3 * 64, 128), lambda p, t: (0, 0)),
            ],
            # The output block index only advances during the last phase, so
            # each (tile_rows, 128) tile is written back to HBM exactly once.
            out_specs=pl.BlockSpec(
                (tile_rows, 128),
                lambda p, t: (t * (p // (_NUM_PHASES - 1)), 0)),
            scratch_shapes=[
                pltpu.VMEM((2, 32), jnp.float32),    # layer-1 mean / M2
                pltpu.VMEM((2, 64), jnp.float32),    # layer-2 mean / M2
                pltpu.VMEM((2, 128), jnp.float32),   # layer-3 mean / M2
            ],
        )
        out2d = pl.pallas_call(
            functools.partial(_tiled_kernel, rows_total=rows),
            out_shape=jax.ShapeDtypeStruct((rows, 128), jnp.float32),
            grid_spec=grid_spec,
            compiler_params=cp,
            cost_estimate=cost,
        )(x2d, masks, w0, w1, w2)

    out = out2d.reshape(n, l, 128)
    if ncl_output:
        out = jnp.transpose(out, (0, 2, 1))          # PyTorch (N, C, L)
    return out


# ----------------------------------------------------------------------------
# Parameter construction (matches PyTorch __init__ shapes / distributions)
# ----------------------------------------------------------------------------
def _make_gabor_weight(key, out_channels=32, in_channels=1, kernel_size=7):
    k1, k2 = jax.random.split(key)
    rint = jax.random.randint(k1, (out_channels, in_channels), 0, 5).astype(jnp.float32)
    freq = (np.pi / 2) * 1.41 ** (-rint)
    psi = np.pi * jax.random.uniform(k2, (out_channels, in_channels))
    sigma = np.pi / freq
    t0 = float(np.ceil(kernel_size / 2))                  # = 4.0
    t = jnp.linspace(-t0 + 1.0, t0, kernel_size)          # matches torch.linspace
    t_ = t[None, None, :]
    sig = sigma[:, :, None]
    g = jnp.exp(-0.5 * (t_ ** 2) / (sig + 0.001) ** 2)
    g = g * jnp.cos(freq[:, :, None] * t_ + psi[:, :, None])
    g = g / (sig * np.sqrt(2 * np.pi) + 0.001)
    return g.astype(jnp.float32)                           # (32, 1, 7)


def _uniform_init(key, shape, fan_in):
    bound = 1.0 / np.sqrt(fan_in)
    return jax.random.uniform(key, shape, minval=-bound, maxval=bound,
                              dtype=jnp.float32)


def make_params(key):
    ks = jax.random.split(key, 3)
    # Conv biases omitted: a bias before train-mode BatchNorm is cancelled by
    # the mean subtraction; fresh BatchNorm1d gamma=1 / beta=0 is the identity.
    return {
        "g0_w": _make_gabor_weight(ks[0]),                    # GaborConv1d(1->32, K=7)
        "c1_w": _uniform_init(ks[1], (64, 32, 5), 32 * 5),    # Conv1d(32->64, K=5)
        "c2_w": _uniform_init(ks[2], (128, 64, 3), 64 * 3),   # Conv1d(64->128, K=3)
    }


# ----------------------------------------------------------------------------
# Pure-JAX reference (independent XLA conv path) for the sanity check.
# ----------------------------------------------------------------------------
def _ref_layer(x, w, pad, mm_dtype):
    y = jax.lax.conv_general_dilated(
        x.astype(mm_dtype), w.astype(mm_dtype),
        window_strides=(1,), padding=[(pad, pad)],
        dimension_numbers=("NCW", "OIW", "NCW"),
        preferred_element_type=jnp.float32)
    mean = jnp.mean(y, axis=(0, 2), keepdims=True)
    var = jnp.mean((y - mean) ** 2, axis=(0, 2), keepdims=True)
    y = (y - mean) / jnp.sqrt(var + _BN_EPS)
    return jnp.where(y >= 0, y, _LEAKY_SLOPE * y)


def reference_forward(params, x):
    x = _ref_layer(x, params["g0_w"], 3, jnp.float32)       # stage 1 is f32 (VPU)
    x = _ref_layer(x, params["c1_w"], 2, _MM_DTYPE)
    x = _ref_layer(x, params["c2_w"], 1, _MM_DTYPE)
    return x


if __name__ == "__main__":
    key = jax.random.PRNGKey(0)
    pkey, xkey1, xkey2 = jax.random.split(key, 3)
    params = make_params(pkey)

    # 1) Small single-tile case: batch=2, in_channels=1, length=32.
    x = jax.random.normal(xkey1, (2, 1, 32), dtype=jnp.float32)
    out = jax.block_until_ready(gabor_nn1d_forward(params, x))
    assert out.shape == (2, 128, 32), out.shape
    ref = jax.block_until_ready(reference_forward(params, x))
    np.testing.assert_allclose(np.asarray(out), np.asarray(ref),
                               atol=5e-3, rtol=5e-3)

    # 2) Multi-tile case exercising the 4-phase tiled path (4 tiles x 2 samples).
    x2 = jax.random.normal(xkey2, (8, 1, 32), dtype=jnp.float32)
    out2 = jax.block_until_ready(
        gabor_nn1d_forward(params, x2, target_tile_rows=64))
    assert out2.shape == (8, 128, 32), out2.shape
    ref2 = jax.block_until_ready(reference_forward(params, x2))
    np.testing.assert_allclose(np.asarray(out2), np.asarray(ref2),
                               atol=5e-3, rtol=5e-3)

    print("KERNEL_OK")
</pallas_src>

<mosaic_0001>
module attributes {stable_mosaic.version = 11 : i64} {
  func.func @_single_block_kernel(%arg0: memref<64x1xf32, #tpu.memory_space<vmem>>, %arg1: memref<64x8xf32, #tpu.memory_space<vmem>>, %arg2: memref<7x32xf32, #tpu.memory_space<vmem>>, %arg3: memref<160x64xbf16, #tpu.memory_space<vmem>>, %arg4: memref<192x128xbf16, #tpu.memory_space<vmem>>, %arg5: memref<64x128xf32, #tpu.memory_space<vmem>>) attributes {dimension_semantics = [], scalar_prefetch = 0 : i64, scratch_operands = 0 : i64, tpu.core_type = #tpu.core_type<tc>} {
    %c0 = arith.constant 0 : index
    %c0_0 = arith.constant 0 : index
    %0 = vector.load %arg0[%c0, %c0_0] : memref<64x1xf32, #tpu.memory_space<vmem>>, vector<64x1xf32>
    %1 = vector.shape_cast %0 : vector<64x1xf32> to vector<64x1xf32>
    %2 = vector.broadcast %1 : vector<64x1xf32> to vector<64x32xf32>
    %c3_i32 = arith.constant 3 : i32
    %3 = tpu.dynamic_rotate %2 by %c3_i32 dim 0 : vector<64x32xf32>, i32 -> vector<64x32xf32>
    %c0_1 = arith.constant 0 : index
    %c0_2 = arith.constant 0 : index
    %4 = vector.load %arg1[%c0_1, %c0_2] : memref<64x8xf32, #tpu.memory_space<vmem>>, vector<64x1xf32>
    %5 = vector.broadcast %4 : vector<64x1xf32> to vector<64x32xf32>
    %6 = arith.mulf %3, %5 : vector<64x32xf32>
    %c0_3 = arith.constant 0 : index
    %c0_4 = arith.constant 0 : index
    %7 = vector.load %arg2[%c0_3, %c0_4] : memref<7x32xf32, #tpu.memory_space<vmem>>, vector<1x32xf32>
    %8 = vector.broadcast %7 : vector<1x32xf32> to vector<64x32xf32>
    %9 = arith.mulf %6, %8 : vector<64x32xf32>
    %c2_i32 = arith.constant 2 : i32
    %10 = tpu.dynamic_rotate %2 by %c2_i32 dim 0 : vector<64x32xf32>, i32 -> vector<64x32xf32>
    %c0_5 = arith.constant 0 : index
    %c1 = arith.constant 1 : index
    %11 = vector.load %arg1[%c0_5, %c1] : memref<64x8xf32, #tpu.memory_space<vmem>>, vector<64x1xf32>
    %12 = vector.broadcast %11 : vector<64x1xf32> to vector<64x32xf32>
    %13 = arith.mulf %10, %12 : vector<64x32xf32>
    %c1_6 = arith.constant 1 : index
    %c0_7 = arith.constant 0 : index
    %14 = vector.load %arg2[%c1_6, %c0_7] : memref<7x32xf32, #tpu.memory_space<vmem>>, vector<1x32xf32>
    %15 = vector.broadcast %14 : vector<1x32xf32> to vector<64x32xf32>
    %16 = arith.mulf %13, %15 : vector<64x32xf32>
    %17 = arith.addf %9, %16 : vector<64x32xf32>
    %c1_i32 = arith.constant 1 : i32
    %18 = tpu.dynamic_rotate %2 by %c1_i32 dim 0 : vector<64x32xf32>, i32 -> vector<64x32xf32>
    %c0_8 = arith.constant 0 : index
    %c2 = arith.constant 2 : index
    %19 = vector.load %arg1[%c0_8, %c2] : memref<64x8xf32, #tpu.memory_space<vmem>>, vector<64x1xf32>
    %20 = vector.broadcast %19 : vector<64x1xf32> to vector<64x32xf32>
    %21 = arith.mulf %18, %20 : vector<64x32xf32>
    %c2_9 = arith.constant 2 : index
    %c0_10 = arith.constant 0 : index
    %22 = vector.load %arg2[%c2_9, %c0_10] : memref<7x32xf32, #tpu.memory_space<vmem>>, vector<1x32xf32>
    %23 = vector.broadcast %22 : vector<1x32xf32> to vector<64x32xf32>
    %24 = arith.mulf %21, %23 : vector<64x32xf32>
    %25 = arith.addf %17, %24 : vector<64x32xf32>
    %c3 = arith.constant 3 : index
    %c0_11 = arith.constant 0 : index
    %26 = vector.load %arg2[%c3, %c0_11] : memref<7x32xf32, #tpu.memory_space<vmem>>, vector<1x32xf32>
    %27 = vector.broadcast %26 : vector<1x32xf32> to vector<64x32xf32>
    %28 = arith.mulf %2, %27 : vector<64x32xf32>
    %29 = arith.addf %25, %28 : vector<64x32xf32>
    %c63_i32 = arith.constant 63 : i32
    %30 = tpu.dynamic_rotate %2 by %c63_i32 dim 0 : vector<64x32xf32>, i32 -> vector<64x32xf32>
    %c0_12 = arith.constant 0 : index
    %c4 = arith.constant 4 : index
    %31 = vector.load %arg1[%c0_12, %c4] : memref<64x8xf32, #tpu.memory_space<vmem>>, vector<64x1xf32>
    %32 = vector.broadcast %31 : vector<64x1xf32> to vector<64x32xf32>
    %33 = arith.mulf %30, %32 : vector<64x32xf32>
    %c4_13 = arith.constant 4 : index
    %c0_14 = arith.constant 0 : index
    %34 = vector.load %arg2[%c4_13, %c0_14] : memref<7x32xf32, #tpu.memory_space<vmem>>, vector<1x32xf32>
    %35 = vector.broadcast %34 : vector<1x32xf32> to vector<64x32xf32>
    %36 = arith.mulf %33, %35 : vector<64x32xf32>
    %37 = arith.addf %29, %36 : vector<64x32xf32>
    %c62_i32 = arith.constant 62 : i32
    %38 = tpu.dynamic_rotate %2 by %c62_i32 dim 0 : vector<64x32xf32>, i32 -> vector<64x32xf32>
    %c0_15 = arith.constant 0 : index
    %c5 = arith.constant 5 : index
    %39 = vector.load %arg1[%c0_15, %c5] : memref<64x8xf32, #tpu.memory_space<vmem>>, vector<64x1xf32>
    %40 = vector.broadcast %39 : vector<64x1xf32> to vector<64x32xf32>
    %41 = arith.mulf %38, %40 : vector<64x32xf32>
    %c5_16 = arith.constant 5 : index
    %c0_17 = arith.constant 0 : index
    %42 = vector.load %arg2[%c5_16, %c0_17] : memref<7x32xf32, #tpu.memory_space<vmem>>, vector<1x32xf32>
    %43 = vector.broadcast %42 : vector<1x32xf32> to vector<64x32xf32>
    %44 = arith.mulf %41, %43 : vector<64x32xf32>
    %45 = arith.addf %37, %44 : vector<64x32xf32>
    %c61_i32 = arith.constant 61 : i32
    %46 = tpu.dynamic_rotate %2 by %c61_i32 dim 0 : vector<64x32xf32>, i32 -> vector<64x32xf32>
    %c0_18 = arith.constant 0 : index
    %c6 = arith.constant 6 : index
    %47 = vector.load %arg1[%c0_18, %c6] : memref<64x8xf32, #tpu.memory_space<vmem>>, vector<64x1xf32>
    %48 = vector.broadcast %47 : vector<64x1xf32> to vector<64x32xf32>
    %49 = arith.mulf %46, %48 : vector<64x32xf32>
    %c6_19 = arith.constant 6 : index
    %c0_20 = arith.constant 0 : index
    %50 = vector.load %arg2[%c6_19, %c0_20] : memref<7x32xf32, #tpu.memory_space<vmem>>, vector<1x32xf32>
    %51 = vector.broadcast %50 : vector<1x32xf32> to vector<64x32xf32>
    %52 = arith.mulf %49, %51 : vector<64x32xf32>
    %53 = arith.addf %45, %52 : vector<64x32xf32>
    %cst = arith.constant dense<0.000000e+00> : vector<32xf32>
    %54 = vector.multi_reduction <add>, %53, %cst [0] : vector<64x32xf32> to vector<32xf32>
    %55 = vector.shape_cast %54 : vector<32xf32> to vector<1x32xf32>
    %cst_21 = arith.constant 1.562500e-02 : f32
    %56 = vector.broadcast %cst_21 : f32 to vector<1x32xf32>
    %57 = arith.mulf %55, %56 : vector<1x32xf32>
    %58 = vector.broadcast %57 : vector<1x32xf32> to vector<64x32xf32>
    %59 = arith.subf %53, %58 : vector<64x32xf32>
    %60 = arith.mulf %59, %59 : vector<64x32xf32>
    %cst_22 = arith.constant dense<0.000000e+00> : vector<32xf32>
    %61 = vector.multi_reduction <add>, %60, %cst_22 [0] : vector<64x32xf32> to vector<32xf32>
    %62 = vector.shape_cast %61 : vector<32xf32> to vector<1x32xf32>
    %cst_23 = arith.constant 1.562500e-02 : f32
    %63 = vector.broadcast %cst_23 : f32 to vector<1x32xf32>
    %64 = arith.mulf %62, %63 : vector<1x32xf32>
    %cst_24 = arith.constant 9.99999974E-6 : f32
    %65 = vector.broadcast %cst_24 : f32 to vector<1x32xf32>
    %66 = arith.addf %64, %65 : vector<1x32xf32>
    %67 = math.rsqrt %66 : vector<1x32xf32>
    %68 = vector.broadcast %67 : vector<1x32xf32> to vector<64x32xf32>
    %69 = arith.mulf %59, %68 : vector<64x32xf32>
    %cst_25 = arith.constant 0.00999999977 : f32
    %70 = vector.broadcast %cst_25 : f32 to vector<64x32xf32>
    %71 = arith.mulf %70, %69 : vector<64x32xf32>
    %72 = arith.maximumf %69, %71 : vector<64x32xf32>
    %c2_i32_26 = arith.constant 2 : i32
    %73 = tpu.dynamic_rotate %72 by %c2_i32_26 dim 0 : vector<64x32xf32>, i32 -> vector<64x32xf32>
    %c0_27 = arith.constant 0 : index
    %c1_28 = arith.constant 1 : index
    %74 = vector.load %arg1[%c0_27, %c1_28] : memref<64x8xf32, #tpu.memory_space<vmem>>, vector<64x1xf32>
    %75 = vector.broadcast %74 : vector<64x1xf32> to vector<64x32xf32>
    %76 = arith.mulf %73, %75 : vector<64x32xf32>
    %77 = arith.truncf %76 : vector<64x32xf32> to vector<64x32xbf16>
    %c1_i32_29 = arith.constant 1 : i32
    %78 = tpu.dynamic_rotate %72 by %c1_i32_29 dim 0 : vector<64x32xf32>, i32 -> vector<64x32xf32>
    %c0_30 = arith.constant 0 : index
    %c2_31 = arith.constant 2 : index
    %79 = vector.load %arg1[%c0_30, %c2_31] : memref<64x8xf32, #tpu.memory_space<vmem>>, vector<64x1xf32>
    %80 = vector.broadcast %79 : vector<64x1xf32> to vector<64x32xf32>
    %81 = arith.mulf %78, %80 : vector<64x32xf32>
    %82 = arith.truncf %81 : vector<64x32xf32> to vector<64x32xbf16>
    %83 = arith.truncf %72 : vector<64x32xf32> to vector<64x32xbf16>
    %c63_i32_32 = arith.constant 63 : i32
    %84 = tpu.dynamic_rotate %72 by %c63_i32_32 dim 0 : vector<64x32xf32>, i32 -> vector<64x32xf32>
    %c0_33 = arith.constant 0 : index
    %c4_34 = arith.constant 4 : index
    %85 = vector.load %arg1[%c0_33, %c4_34] : memref<64x8xf32, #tpu.memory_space<vmem>>, vector<64x1xf32>
    %86 = vector.broadcast %85 : vector<64x1xf32> to vector<64x32xf32>
    %87 = arith.mulf %84, %86 : vector<64x32xf32>
    %88 = arith.truncf %87 : vector<64x32xf32> to vector<64x32xbf16>
    %c62_i32_35 = arith.constant 62 : i32
    %89 = tpu.dynamic_rotate %72 by %c62_i32_35 dim 0 : vector<64x32xf32>, i32 -> vector<64x32xf32>
    %c0_36 = arith.constant 0 : index
    %c5_37 = arith.constant 5 : index
    %90 = vector.load %arg1[%c0_36, %c5_37] : memref<64x8xf32, #tpu.memory_space<vmem>>, vector<64x1xf32>
    %91 = vector.broadcast %90 : vector<64x1xf32> to vector<64x32xf32>
    %92 = arith.mulf %89, %91 : vector<64x32xf32>
    %93 = arith.truncf %92 : vector<64x32xf32> to vector<64x32xbf16>
    %94 = tpu.concatenate %77, %82, %83, %88, %93 in 1 : vector<64x32xbf16>, vector<64x32xbf16>, vector<64x32xbf16>, vector<64x32xbf16>, vector<64x32xbf16> -> vector<64x160xbf16>
    %c0_38 = arith.constant 0 : index
    %c0_39 = arith.constant 0 : index
    %95 = vector.load %arg3[%c0_38, %c0_39] : memref<160x64xbf16, #tpu.memory_space<vmem>>, vector<160x64xbf16>
    %cst_40 = arith.constant dense<0.000000e+00> : vector<64x64xf32>
    %96 = tpu.matmul %94, %95, %cst_40 {dimension_numbers = #tpu.dot_dimension_numbers<[1], [0], [0], [1], [0, 0, 1, 1], [], []>} : vector<64x160xbf16>, vector<160x64xbf16>, vector<64x64xf32> -> vector<64x64xf32>
    %cst_41 = arith.constant dense<0.000000e+00> : vector<64xf32>
    %97 = vector.multi_reduction <add>, %96, %cst_41 [0] : vector<64x64xf32> to vector<64xf32>
    %98 = vector.shape_cast %97 : vector<64xf32> to vector<1x64xf32>
    %cst_42 = arith.constant 1.562500e-02 : f32
    %99 = vector.broadcast %cst_42 : f32 to vector<1x64xf32>
    %100 = arith.mulf %98, %99 : vector<1x64xf32>
    %101 = vector.broadcast %100 : vector<1x64xf32> to vector<64x64xf32>
    %102 = arith.subf %96, %101 : vector<64x64xf32>
    %103 = arith.mulf %102, %102 : vector<64x64xf32>
    %cst_43 = arith.constant dense<0.000000e+00> : vector<64xf32>
    %104 = vector.multi_reduction <add>, %103, %cst_43 [0] : vector<64x64xf32> to vector<64xf32>
    %105 = vector.shape_cast %104 : vector<64xf32> to vector<1x64xf32>
    %cst_44 = arith.constant 1.562500e-02 : f32
    %106 = vector.broadcast %cst_44 : f32 to vector<1x64xf32>
    %107 = arith.mulf %105, %106 : vector<1x64xf32>
    %cst_45 = arith.constant 9.99999974E-6 : f32
    %108 = vector.broadcast %cst_45 : f32 to vector<1x64xf32>
    %109 = arith.addf %107, %108 : vector<1x64xf32>
    %110 = math.rsqrt %109 : vector<1x64xf32>
    %111 = vector.broadcast %110 : vector<1x64xf32> to vector<64x64xf32>
    %112 = arith.mulf %102, %111 : vector<64x64xf32>
    %cst_46 = arith.constant 0.00999999977 : f32
    %113 = vector.broadcast %cst_46 : f32 to vector<64x64xf32>
    %114 = arith.mulf %113, %112 : vector<64x64xf32>
    %115 = arith.maximumf %112, %114 : vector<64x64xf32>
    %c1_i32_47 = arith.constant 1 : i32
    %116 = tpu.dynamic_rotate %115 by %c1_i32_47 dim 0 : vector<64x64xf32>, i32 -> vector<64x64xf32>
    %c0_48 = arith.constant 0 : index
    %c2_49 = arith.constant 2 : index
    %117 = vector.load %arg1[%c0_48, %c2_49] : memref<64x8xf32, #tpu.memory_space<vmem>>, vector<64x1xf32>
    %118 = vector.broadcast %117 : vector<64x1xf32> to vector<64x64xf32>
    %119 = arith.mulf %116, %118 : vector<64x64xf32>
    %120 = arith.truncf %119 : vector<64x64xf32> to vector<64x64xbf16>
    %121 = arith.truncf %115 : vector<64x64xf32> to vector<64x64xbf16>
    %c63_i32_50 = arith.constant 63 : i32
    %122 = tpu.dynamic_rotate %115 by %c63_i32_50 dim 0 : vector<64x64xf32>, i32 -> vector<64x64xf32>
    %c0_51 = arith.constant 0 : index
    %c4_52 = arith.constant 4 : index
    %123 = vector.load %arg1[%c0_51, %c4_52] : memref<64x8xf32, #tpu.memory_space<vmem>>, vector<64x1xf32>
    %124 = vector.broadcast %123 : vector<64x1xf32> to vector<64x64xf32>
    %125 = arith.mulf %122, %124 : vector<64x64xf32>
    %126 = arith.truncf %125 : vector<64x64xf32> to vector<64x64xbf16>
    %127 = tpu.concatenate %120, %121, %126 in 1 : vector<64x64xbf16>, vector<64x64xbf16>, vector<64x64xbf16> -> vector<64x192xbf16>
    %c0_53 = arith.constant 0 : index
    %c0_54 = arith.constant 0 : index
    %128 = vector.load %arg4[%c0_53, %c0_54] : memref<192x128xbf16, #tpu.memory_space<vmem>>, vector<192x128xbf16>
    %cst_55 = arith.constant dense<0.000000e+00> : vector<64x128xf32>
    %129 = tpu.matmul %127, %128, %cst_55 {dimension_numbers = #tpu.dot_dimension_numbers<[1], [0], [0], [1], [0, 0, 1, 1], [], []>} : vector<64x192xbf16>, vector<192x128xbf16>, vector<64x128xf32> -> vector<64x128xf32>
    %cst_56 = arith.constant dense<0.000000e+00> : vector<128xf32>
    %130 = vector.multi_reduction <add>, %129, %cst_56 [0] : vector<64x128xf32> to vector<128xf32>
    %131 = vector.shape_cast %130 : vector<128xf32> to vector<1x128xf32>
    %cst_57 = arith.constant 1.562500e-02 : f32
    %132 = vector.broadcast %cst_57 : f32 to vector<1x128xf32>
    %133 = arith.mulf %131, %132 : vector<1x128xf32>
    %134 = vector.broadcast %133 : vector<1x128xf32> to vector<64x128xf32>
    %135 = arith.subf %129, %134 : vector<64x128xf32>
    %136 = arith.mulf %135, %135 : vector<64x128xf32>
    %cst_58 = arith.constant dense<0.000000e+00> : vector<128xf32>
    %137 = vector.multi_reduction <add>, %136, %cst_58 [0] : vector<64x128xf32> to vector<128xf32>
    %138 = vector.shape_cast %137 : vector<128xf32> to vector<1x128xf32>
    %cst_59 = arith.constant 1.562500e-02 : f32
    %139 = vector.broadcast %cst_59 : f32 to vector<1x128xf32>
    %140 = arith.mulf %138, %139 : vector<1x128xf32>
    %cst_60 = arith.constant 9.99999974E-6 : f32
    %141 = vector.broadcast %cst_60 : f32 to vector<1x128xf32>
    %142 = arith.addf %140, %141 : vector<1x128xf32>
    %143 = math.rsqrt %142 : vector<1x128xf32>
    %144 = vector.broadcast %143 : vector<1x128xf32> to vector<64x128xf32>
    %145 = arith.mulf %135, %144 : vector<64x128xf32>
    %cst_61 = arith.constant 0.00999999977 : f32
    %146 = vector.broadcast %cst_61 : f32 to vector<64x128xf32>
    %147 = arith.mulf %146, %145 : vector<64x128xf32>
    %148 = arith.maximumf %145, %147 : vector<64x128xf32>
    %c0_62 = arith.constant 0 : index
    %c0_63 = arith.constant 0 : index
    %149 = vector.load %arg5[%c0_62, %c0_63] : memref<64x128xf32, #tpu.memory_space<vmem>>, vector<64x128xf32>
    tpu.vector_store %arg5[%c0_62, %c0_63], %148 {strides = array<i32>} : memref<64x128xf32, #tpu.memory_space<vmem>>, vector<64x128xf32>,
    return
  }
}

</mosaic_0001>

<llo_original>
// kernel: gabor_nn1d_forward.1
$region0: #{gabor_nn1d_forward.1}
  #allocation0 [shape = 'u32[]', space=smem, size = 0x4, offset = 0x4, fixed_abs, tag = 'smem constant byte address 0x4 - core index']
  #allocation1 [shape = 'u32[72,128]{1,0:T(1,128)}', space=vmem, size = 0x9000, scoped, tag = 'internal scratch']
  %s0 = inlined_call_operand.vmem [shape: f32[64,1], index: 0, kind: input, shape index: {}]
  %s1 = inlined_call_operand.vmem [shape: f32[64,8], index: 1, kind: input, shape index: {}]
  %s2 = inlined_call_operand.vmem [shape: f32[7,32], index: 2, kind: input, shape index: {}]
  %s3 = inlined_call_operand.vmem [shape: bf16[160,64], index: 3, kind: input, shape index: {}]
  %s4 = inlined_call_operand.vmem [shape: bf16[192,128], index: 4, kind: input, shape index: {}]
  %s5 = inlined_call_operand.hbm [shape: f32[64,128], index: 5, kind: output, shape index: {}]
  %s6 = sld [smem:[#allocation0]]
  $region30: #{gabor_nn1d_forward.1} parent=0
    _
  %s8 = ssub.s32 1, %s6
  %s9 = scalar_select 0, %s8, %s6
  $region1: #{gabor_nn1d_forward.1} parent=0
    #allocation2 [shape = 'u8[32768]{0}', space=vmem, size = 0x8000, scoped, tag = 'output window, operand 0, single buffered']
    #allocation3 [shape = 's32[1]{0}', space=sflag, size = 0x4, scoped, tag = 'scoped memory for gabor_nn1d_forward.1']
    %10 = vsyncpa [#allocation3], 0
    // Predicated region
    $region2: #{gabor_nn1d_forward.1} parent=1 // pred_check
      _
    $region3: #{gabor_nn1d_forward.1} parent=1 // pred_check_branch
      %12 = sbr.rel (0) target = $region5
    $region4: #{gabor_nn1d_forward.1} parent=1 // pred_region
      _
    $region5: #{gabor_nn1d_forward.1} parent=1 // pred_fallthru
      _
    // Predicated region
    $region6: #{gabor_nn1d_forward.1} parent=1 // pred_check
      _
    $region7: #{gabor_nn1d_forward.1} parent=1 // pred_check_branch
      %14 = sbr.rel (0) target = $region9
    $region8: #{gabor_nn1d_forward.1} parent=1 // pred_region
      _
    $region9: #{gabor_nn1d_forward.1} parent=1 // pred_fallthru
      _
    // Predicated region
    $region10: #{gabor_nn1d_forward.1} parent=1 // pred_check
      _
    $region11: #{gabor_nn1d_forward.1} parent=1 // pred_check_branch
      %16 = sbr.rel (0) target = $region13
    $region12: #{gabor_nn1d_forward.1} parent=1 // pred_region
      _
    $region13: #{gabor_nn1d_forward.1} parent=1 // pred_fallthru
      _
    // Predicated region
    $region14: #{gabor_nn1d_forward.1} parent=1 // pred_check
      _
    $region15: #{gabor_nn1d_forward.1} parent=1 // pred_check_branch
      %18 = sbr.rel (0) target = $region17
    $region16: #{gabor_nn1d_forward.1} parent=1 // pred_region
      _
    $region17: #{gabor_nn1d_forward.1} parent=1 // pred_fallthru
      _
    // Predicated region
    $region18: #{gabor_nn1d_forward.1} parent=1 // pred_check
      _
    $region19: #{gabor_nn1d_forward.1} parent=1 // pred_check_branch
      %20 = sbr.rel (0) target = $region21
    $region20: #{gabor_nn1d_forward.1} parent=1 // pred_region
      _
    $region21: #{gabor_nn1d_forward.1} parent=1 // pred_fallthru
      _
    %v22 = vld [vmem:[%s0] sm:$0xff]
    %v23 = vld [vmem:[%s0 + $0x8] sm:$0xff]
    %v24 = vld [vmem:[%s0 + $0x10] sm:$0xff]
    %v25 = vld [vmem:[%s0 + $0x18] sm:$0xff]
    %v26 = vld [vmem:[%s0 + $0x20] sm:$0xff]
    %v27 = vld [vmem:[%s0 + $0x28] sm:$0xff]
    %v28 = vld [vmem:[%s0 + $0x30] sm:$0xff]
    %v29 = vld [vmem:[%s0 + $0x38] sm:$0xff]
    %31 = vset.pattern.permute.xlu0 0
    %32 = vperm.xlu0 %31, %v22
    %v33 = vpop.permute.xlu0 %32
    %36 = vset.pattern.permute.xlu0 0
    %37 = vperm.xlu0 %36, %v23
    %v38 = vpop.permute.xlu0 %37
    %41 = vset.pattern.permute.xlu0 0
    %42 = vperm.xlu0 %41, %v24
    %v43 = vpop.permute.xlu0 %42
    %46 = vset.pattern.permute.xlu0 0
    %47 = vperm.xlu0 %46, %v25
    %v48 = vpop.permute.xlu0 %47
    %51 = vset.pattern.permute.xlu0 0
    %52 = vperm.xlu0 %51, %v26
    %v53 = vpop.permute.xlu0 %52
    %56 = vset.pattern.permute.xlu0 0
    %57 = vperm.xlu0 %56, %v27
    %v58 = vpop.permute.xlu0 %57
    %61 = vset.pattern.permute.xlu0 0
    %62 = vperm.xlu0 %61, %v28
    %v63 = vpop.permute.xlu0 %62
    %66 = vset.pattern.permute.xlu0 0
    %67 = vperm.xlu0 %66, %v29
    %v68 = vpop.permute.xlu0 %67
    %v70 = vrot.slane %v33, 5
    %v71 = vrot.slane %v38, 5
    %v72 = vrot.slane %v43, 5
    %v73 = vrot.slane %v48, 5
    %v74 = vrot.slane %v53, 5
    %v75 = vrot.slane %v58, 5
    %v76 = vrot.slane %v63, 5
    %v77 = vrot.slane %v68, 5
    %v78 = vlaneseq
    %v79 = vshrl.u32 %v78, 7
    %vm80 = vcmp.lt.s32.totalorder %v79, 3
    %v81 = vsel %vm80, %v76, %v77
    %v82 = vsel %vm80, %v75, %v76
    %v83 = vsel %vm80, %v74, %v75
    %v84 = vsel %vm80, %v73, %v74
    %v85 = vsel %vm80, %v72, %v73
    %v86 = vsel %vm80, %v71, %v72
    %v87 = vsel %vm80, %v70, %v71
    %v88 = vsel %vm80, %v77, %v70
    %v89 = vld [vmem:[%s1] sm:$0xff]
    %v90 = vld [vmem:[%s1 + $0x8] sm:$0xff]
    %v91 = vld [vmem:[%s1 + $0x10] sm:$0xff]
    %v92 = vld [vmem:[%s1 + $0x18] sm:$0xff]
    %v93 = vld [vmem:[%s1 + $0x20] sm:$0xff]
    %v94 = vld [vmem:[%s1 + $0x28] sm:$0xff]
    %v95 = vld [vmem:[%s1 + $0x30] sm:$0xff]
    %v96 = vld [vmem:[%s1 + $0x38] sm:$0xff]
    %98 = vset.pattern.permute.xlu0 0
    %99 = vperm.xlu0 %98, %v89
    %v100 = vpop.permute.xlu0 %99
    %103 = vset.pattern.permute.xlu0 0
    %104 = vperm.xlu0 %103, %v90
    %v105 = vpop.permute.xlu0 %104
    %108 = vset.pattern.permute.xlu0 0
    %109 = vperm.xlu0 %108, %v91
    %v110 = vpop.permute.xlu0 %109
    %113 = vset.pattern.permute.xlu0 0
    %114 = vperm.xlu0 %113, %v92
    %v115 = vpop.permute.xlu0 %114
    %118 = vset.pattern.permute.xlu0 0
    %119 = vperm.xlu0 %118, %v93
    %v120 = vpop.permute.xlu0 %119
    %123 = vset.pattern.permute.xlu0 0
    %124 = vperm.xlu0 %123, %v94
    %v125 = vpop.permute.xlu0 %124
    %128 = vset.pattern.permute.xlu0 0
    %129 = vperm.xlu0 %128, %v95
    %v130 = vpop.permute.xlu0 %129
    %133 = vset.pattern.permute.xlu0 0
    %134 = vperm.xlu0 %133, %v96
    %v135 = vpop.permute.xlu0 %134
    %v137 = vmul.f32 %v88, %v100
    %v138 = vmul.f32 %v87, %v105
    %v139 = vmul.f32 %v86, %v110
    %v140 = vmul.f32 %v85, %v115
    %v141 = vmul.f32 %v84, %v120
    %v142 = vmul.f32 %v83, %v125
    %v143 = vmul.f32 %v82, %v130
    %v144 = vmul.f32 %v81, %v135
    %v145 = vld [vmem:[%s2] sm:$0x1]
    %v146 = vperm.slane %v145, 0
    %v147 = vmul.f32 %v137, %v146
    %v148 = vmul.f32 %v138, %v146
    %v149 = vmul.f32 %v139, %v146
    %v150 = vmul.f32 %v140, %v146
    %v151 = vmul.f32 %v141, %v146
    %v152 = vmul.f32 %v142, %v146
    %v153 = vmul.f32 %v143, %v146
    %v154 = vmul.f32 %v144, %v146
    %v155 = vrot.slane %v33, 6
    %v156 = vrot.slane %v38, 6
    %v157 = vrot.slane %v43, 6
    %v158 = vrot.slane %v48, 6
    %v159 = vrot.slane %v53, 6
    %v160 = vrot.slane %v58, 6
    %v161 = vrot.slane %v63, 6
    %v162 = vrot.slane %v68, 6
    %vm163 = vcmp.lt.s32.totalorder %v79, 2
    %v164 = vsel %vm163, %v161, %v162
    %v165 = vsel %vm163, %v160, %v161
    %v166 = vsel %vm163, %v159, %v160
    %v167 = vsel %vm163, %v158, %v159
    %v168 = vsel %vm163, %v157, %v158
    %v169 = vsel %vm163, %v156, %v157
    %v170 = vsel %vm163, %v155, %v156
    %v171 = vsel %vm163, %v162, %v155
    %172 = vset.pattern.permute.xlu0 1
    %173 = vperm.xlu0 %172, %v89
    %v174 = vpop.permute.xlu0 %173
    %176 = vset.pattern.permute.xlu0 1
    %177 = vperm.xlu0 %176, %v90
    %v178 = vpop.permute.xlu0 %177
    %180 = vset.pattern.permute.xlu0 1
    %181 = vperm.xlu0 %180, %v91
    %v182 = vpop.permute.xlu0 %181
    %184 = vset.pattern.permute.xlu0 1
    %185 = vperm.xlu0 %184, %v92
    %v186 = vpop.permute.xlu0 %185
    %188 = vset.pattern.permute.xlu0 1
    %189 = vperm.xlu0 %188, %v93
    %v190 = vpop.permute.xlu0 %189
    %192 = vset.pattern.permute.xlu0 1
    %193 = vperm.xlu0 %192, %v94
    %v194 = vpop.permute.xlu0 %193
    %196 = vset.pattern.permute.xlu0 1
    %197 = vperm.xlu0 %196, %v95
    %v198 = vpop.permute.xlu0 %197
    %200 = vset.pattern.permute.xlu0 1
    %201 = vperm.xlu0 %200, %v96
    %v202 = vpop.permute.xlu0 %201
    %v204 = vmul.f32 %v171, %v174
    %v205 = vmul.f32 %v170, %v178
    %v206 = vmul.f32 %v169, %v182
    %v207 = vmul.f32 %v168, %v186
    %v208 = vmul.f32 %v167, %v190
    %v209 = vmul.f32 %v166, %v194
    %v210 = vmul.f32 %v165, %v198
    %v211 = vmul.f32 %v164, %v202
    %v212 = vld [vmem:[%s2 + $0x1] sm:$0x1]
    %v213 = vperm.slane %v212, 0
    %v214 = vmul.f32 %v204, %v213
    %v215 = vmul.f32 %v205, %v213
    %v216 = vmul.f32 %v206, %v213
    %v217 = vmul.f32 %v207, %v213
    %v218 = vmul.f32 %v208, %v213
    %v219 = vmul.f32 %v209, %v213
    %v220 = vmul.f32 %v210, %v213
    %v221 = vmul.f32 %v211, %v213
    %v222 = vadd.f32 %v147, %v214
    %v223 = vadd.f32 %v148, %v215
    %v224 = vadd.f32 %v149, %v216
    %v225 = vadd.f32 %v150, %v217
    %v226 = vadd.f32 %v151, %v218
    %v227 = vadd.f32 %v152, %v219
    %v228 = vadd.f32 %v153, %v220
    %v229 = vadd.f32 %v154, %v221
    %v230 = vrot.slane %v33, 7
    %v231 = vrot.slane %v38, 7
    %v232 = vrot.slane %v43, 7
    %v233 = vrot.slane %v48, 7
    %v234 = vrot.slane %v53, 7
    %v235 = vrot.slane %v58, 7
    %v236 = vrot.slane %v63, 7
    %v237 = vrot.slane %v68, 7
    %vm238 = vcmp.lt.s32.totalorder %v79, 1
    %v239 = vsel %vm238, %v236, %v237
    %v240 = vsel %vm238, %v235, %v236
    %v241 = vsel %vm238, %v234, %v235
    %v242 = vsel %vm238, %v233, %v234
    %v243 = vsel %vm238, %v232, %v233
    %v244 = vsel %vm238, %v231, %v232
    %v245 = vsel %vm238, %v230, %v231
    %v246 = vsel %vm238, %v237, %v230
    %247 = vset.pattern.permute.xlu0 2
    %248 = vperm.xlu0 %247, %v89
    %v249 = vpop.permute.xlu0 %248
    %251 = vset.pattern.permute.xlu0 2
    %252 = vperm.xlu0 %251, %v90
    %v253 = vpop.permute.xlu0 %252
    %255 = vset.pattern.permute.xlu0 2
    %256 = vperm.xlu0 %255, %v91
    %v257 = vpop.permute.xlu0 %256
    %259 = vset.pattern.permute.xlu0 2
    %260 = vperm.xlu0 %259, %v92
    %v261 = vpop.permute.xlu0 %260
    %263 = vset.pattern.permute.xlu0 2
    %264 = vperm.xlu0 %263, %v93
    %v265 = vpop.permute.xlu0 %264
    %267 = vset.pattern.permute.xlu0 2
    %268 = vperm.xlu0 %267, %v94
    %v269 = vpop.permute.xlu0 %268
    %271 = vset.pattern.permute.xlu0 2
    %272 = vperm.xlu0 %271, %v95
    %v273 = vpop.permute.xlu0 %272
    %275 = vset.pattern.permute.xlu0 2
    %276 = vperm.xlu0 %275, %v96
    %v277 = vpop.permute.xlu0 %276
    %v279 = vmul.f32 %v246, %v249
    %v280 = vmul.f32 %v245, %v253
    %v281 = vmul.f32 %v244, %v257
    %v282 = vmul.f32 %v243, %v261
    %v283 = vmul.f32 %v242, %v265
    %v284 = vmul.f32 %v241, %v269
    %v285 = vmul.f32 %v240, %v273
    %v286 = vmul.f32 %v239, %v277
    %v287 = vld [vmem:[%s2 + $0x2] sm:$0x1]
    %v288 = vperm.slane %v287, 0
    %v289 = vmul.f32 %v279, %v288
    %v290 = vmul.f32 %v280, %v288
    %v291 = vmul.f32 %v281, %v288
    %v292 = vmul.f32 %v282, %v288
    %v293 = vmul.f32 %v283, %v288
    %v294 = vmul.f32 %v284, %v288
    %v295 = vmul.f32 %v285, %v288
    %v296 = vmul.f32 %v286, %v288
    %v297 = vadd.f32 %v222, %v289
    %v298 = vadd.f32 %v223, %v290
    %v299 = vadd.f32 %v224, %v291
    %v300 = vadd.f32 %v225, %v292
    %v301 = vadd.f32 %v226, %v293
    %v302 = vadd.f32 %v227, %v294
    %v303 = vadd.f32 %v228, %v295
    %v304 = vadd.f32 %v229, %v296
    %v305 = vld [vmem:[%s2 + $0x3] sm:$0x1]
    %v306 = vperm.slane %v305, 0
    %v307 = vmul.f32 %v33, %v306
    %v308 = vmul.f32 %v38, %v306
    %v309 = vmul.f32 %v43, %v306
    %v310 = vmul.f32 %v48, %v306
    %v311 = vmul.f32 %v53, %v306
    %v312 = vmul.f32 %v58, %v306
    %v313 = vmul.f32 %v63, %v306
    %v314 = vmul.f32 %v68, %v306
    %v315 = vadd.f32 %v297, %v307
    %v316 = vadd.f32 %v298, %v308
    %v317 = vadd.f32 %v299, %v309
    %v318 = vadd.f32 %v300, %v310
    %v319 = vadd.f32 %v301, %v311
    %v320 = vadd.f32 %v302, %v312
    %v321 = vadd.f32 %v303, %v313
    %v322 = vadd.f32 %v304, %v314
    %v323 = vrot.slane %v33, 1
    %v324 = vrot.slane %v38, 1
    %v325 = vrot.slane %v43, 1
    %v326 = vrot.slane %v48, 1
    %v327 = vrot.slane %v53, 1
    %v328 = vrot.slane %v58, 1
    %v329 = vrot.slane %v63, 1
    %v330 = vrot.slane %v68, 1
    %vm331 = vcmp.lt.s32.totalorder %v79, 7
    %v332 = vsel %vm331, %v329, %v330
    %v333 = vsel %vm331, %v328, %v329
    %v334 = vsel %vm331, %v327, %v328
    %v335 = vsel %vm331, %v326, %v327
    %v336 = vsel %vm331, %v325, %v326
    %v337 = vsel %vm331, %v324, %v325
    %v338 = vsel %vm331, %v323, %v324
    %v339 = vsel %vm331, %v330, %v323
    %340 = vset.pattern.permute.xlu0 4
    %341 = vperm.xlu0 %340, %v89
    %v342 = vpop.permute.xlu0 %341
    %344 = vset.pattern.permute.xlu0 4
    %345 = vperm.xlu0 %344, %v90
    %v346 = vpop.permute.xlu0 %345
    %348 = vset.pattern.permute.xlu0 4
    %349 = vperm.xlu0 %348, %v91
    %v350 = vpop.permute.xlu0 %349
    %352 = vset.pattern.permute.xlu0 4
    %353 = vperm.xlu0 %352, %v92
    %v354 = vpop.permute.xlu0 %353
    %356 = vset.pattern.permute.xlu0 4
    %357 = vperm.xlu0 %356, %v93
    %v358 = vpop.permute.xlu0 %357
    %360 = vset.pattern.permute.xlu0 4
    %361 = vperm.xlu0 %360, %v94
    %v362 = vpop.permute.xlu0 %361
    %364 = vset.pattern.permute.xlu0 4
    %365 = vperm.xlu0 %364, %v95
    %v366 = vpop.permute.xlu0 %365
    %368 = vset.pattern.permute.xlu0 4
    %369 = vperm.xlu0 %368, %v96
    %v370 = vpop.permute.xlu0 %369
    %v372 = vmul.f32 %v338, %v342
    %v373 = vmul.f32 %v337, %v346
    %v374 = vmul.f32 %v336, %v350
    %v375 = vmul.f32 %v335, %v354
    %v376 = vmul.f32 %v334, %v358
    %v377 = vmul.f32 %v333, %v362
    %v378 = vmul.f32 %v332, %v366
    %v379 = vmul.f32 %v339, %v370
    %v380 = vld [vmem:[%s2 + $0x4] sm:$0x1]
    %v381 = vperm.slane %v380, 0
    %v382 = vmul.f32 %v372, %v381
    %v383 = vmul.f32 %v373, %v381
    %v384 = vmul.f32 %v374, %v381
    %v385 = vmul.f32 %v375, %v381
    %v386 = vmul.f32 %v376, %v381
    %v387 = vmul.f32 %v377, %v381
    %v388 = vmul.f32 %v378, %v381
    %v389 = vmul.f32 %v379, %v381
    %v390 = vadd.f32 %v315, %v382
    %v391 = vadd.f32 %v316, %v383
    %v392 = vadd.f32 %v317, %v384
    %v393 = vadd.f32 %v318, %v385
    %v394 = vadd.f32 %v319, %v386
    %v395 = vadd.f32 %v320, %v387
    %v396 = vadd.f32 %v321, %v388
    %v397 = vadd.f32 %v322, %v389
    %v398 = vrot.slane %v33, 2
    %v399 = vrot.slane %v38, 2
    %v400 = vrot.slane %v43, 2
    %v401 = vrot.slane %v48, 2
    %v402 = vrot.slane %v53, 2
    %v403 = vrot.slane %v58, 2
    %v404 = vrot.slane %v63, 2
    %v405 = vrot.slane %v68, 2
    %vm406 = vcmp.lt.s32.totalorder %v79, 6
    %v407 = vsel %vm406, %v404, %v405
    %v408 = vsel %vm406, %v403, %v404
    %v409 = vsel %vm406, %v402, %v403
    %v410 = vsel %vm406, %v401, %v402
    %v411 = vsel %vm406, %v400, %v401
    %v412 = vsel %vm406, %v399, %v400
    %v413 = vsel %vm406, %v398, %v399
    %v414 = vsel %vm406, %v405, %v398
    %415 = vset.pattern.permute.xlu0 5
    %416 = vperm.xlu0 %415, %v89
    %v417 = vpop.permute.xlu0 %416
    %419 = vset.pattern.permute.xlu0 5
    %420 = vperm.xlu0 %419, %v90
    %v421 = vpop.permute.xlu0 %420
    %423 = vset.pattern.permute.xlu0 5
    %424 = vperm.xlu0 %423, %v91
    %v425 = vpop.permute.xlu0 %424
    %427 = vset.pattern.permute.xlu0 5
    %428 = vperm.xlu0 %427, %v92
    %v429 = vpop.permute.xlu0 %428
    %431 = vset.pattern.permute.xlu0 5
    %432 = vperm.xlu0 %431, %v93
    %v433 = vpop.permute.xlu0 %432
    %435 = vset.pattern.permute.xlu0 5
    %436 = vperm.xlu0 %435, %v94
    %v437 = vpop.permute.xlu0 %436
    %439 = vset.pattern.permute.xlu0 5
    %440 = vperm.xlu0 %439, %v95
    %v441 = vpop.permute.xlu0 %440
    %443 = vset.pattern.permute.xlu0 5
    %444 = vperm.xlu0 %443, %v96
    %v445 = vpop.permute.xlu0 %444
    %v447 = vmul.f32 %v413, %v417
    %v448 = vmul.f32 %v412, %v421
    %v449 = vmul.f32 %v411, %v425
    %v450 = vmul.f32 %v410, %v429
    %v451 = vmul.f32 %v409, %v433
    %v452 = vmul.f32 %v408, %v437
    %v453 = vmul.f32 %v407, %v441
    %v454 = vmul.f32 %v414, %v445
    %v455 = vld [vmem:[%s2 + $0x5] sm:$0x1]
    %v456 = vperm.slane %v455, 0
    %v457 = vmul.f32 %v447, %v456
    %v458 = vmul.f32 %v448, %v456
    %v459 = vmul.f32 %v449, %v456
    %v460 = vmul.f32 %v450, %v456
    %v461 = vmul.f32 %v451, %v456
    %v462 = vmul.f32 %v452, %v456
    %v463 = vmul.f32 %v453, %v456
    %v464 = vmul.f32 %v454, %v456
    %v465 = vadd.f32 %v390, %v457
    %v466 = vadd.f32 %v391, %v458
    %v467 = vadd.f32 %v392, %v459
    %v468 = vadd.f32 %v393, %v460
    %v469 = vadd.f32 %v394, %v461
    %v470 = vadd.f32 %v395, %v462
    %v471 = vadd.f32 %v396, %v463
    %v472 = vadd.f32 %v397, %v464
    %v473 = vrot.slane %v33, 3
    %v474 = vrot.slane %v38, 3
    %v475 = vrot.slane %v43, 3
    %v476 = vrot.slane %v48, 3
    %v477 = vrot.slane %v53, 3
    %v478 = vrot.slane %v58, 3
    %v479 = vrot.slane %v63, 3
    %v480 = vrot.slane %v68, 3
    %vm481 = vcmp.lt.s32.totalorder %v79, 5
    %v482 = vsel %vm481, %v479, %v480
    %v483 = vsel %vm481, %v478, %v479
    %v484 = vsel %vm481, %v477, %v478
    %v485 = vsel %vm481, %v476, %v477
    %v486 = vsel %vm481, %v475, %v476
    %v487 = vsel %vm481, %v474, %v475
    %v488 = vsel %vm481, %v473, %v474
    %v489 = vsel %vm481, %v480, %v473
    %490 = vset.pattern.permute.xlu0 6
    %491 = vperm.xlu0 %490, %v89
    %v492 = vpop.permute.xlu0 %491
    %494 = vset.pattern.permute.xlu0 6
    %495 = vperm.xlu0 %494, %v90
    %v496 = vpop.permute.xlu0 %495
    %498 = vset.pattern.permute.xlu0 6
    %499 = vperm.xlu0 %498, %v91
    %v500 = vpop.permute.xlu0 %499
    %502 = vset.pattern.permute.xlu0 6
    %503 = vperm.xlu0 %502, %v92
    %v504 = vpop.permute.xlu0 %503
    %506 = vset.pattern.permute.xlu0 6
    %507 = vperm.xlu0 %506, %v93
    %v508 = vpop.permute.xlu0 %507
    %510 = vset.pattern.permute.xlu0 6
    %511 = vperm.xlu0 %510, %v94
    %v512 = vpop.permute.xlu0 %511
    %514 = vset.pattern.permute.xlu0 6
    %515 = vperm.xlu0 %514, %v95
    %v516 = vpop.permute.xlu0 %515
    %518 = vset.pattern.permute.xlu0 6
    %519 = vperm.xlu0 %518, %v96
    %v520 = vpop.permute.xlu0 %519
    %v522 = vmul.f32 %v488, %v492
    %v523 = vmul.f32 %v487, %v496
    %v524 = vmul.f32 %v486, %v500
    %v525 = vmul.f32 %v485, %v504
    %v526 = vmul.f32 %v484, %v508
    %v527 = vmul.f32 %v483, %v512
    %v528 = vmul.f32 %v482, %v516
    %v529 = vmul.f32 %v489, %v520
    %v530 = vld [vmem:[%s2 + $0x6] sm:$0x1]
    %v531 = vperm.slane %v530, 0
    %v532 = vmul.f32 %v522, %v531
    %v533 = vmul.f32 %v523, %v531
    %v534 = vmul.f32 %v524, %v531
    %v535 = vmul.f32 %v525, %v531
    %v536 = vmul.f32 %v526, %v531
    %v537 = vmul.f32 %v527, %v531
    %v538 = vmul.f32 %v528, %v531
    %v539 = vmul.f32 %v529, %v531
    %v540 = vadd.f32 %v465, %v532
    %v541 = vadd.f32 %v466, %v533
    %v542 = vadd.f32 %v467, %v534
    %v543 = vadd.f32 %v468, %v535
    %v544 = vadd.f32 %v469, %v536
    %v545 = vadd.f32 %v470, %v537
    %v546 = vadd.f32 %v471, %v538
    %v547 = vadd.f32 %v472, %v539
    %vm548 = vcmask 261120
    %v549 = vsel %vm548, %v540, 0.0
    %v550 = vsel %vm548, %v541, 0.0
    %v551 = vadd.f32 %v549, %v550
    %v552 = vsel %vm548, %v542, 0.0
    %v553 = vadd.f32 %v551, %v552
    %v554 = vsel %vm548, %v543, 0.0
    %v555 = vadd.f32 %v553, %v554
    %v556 = vsel %vm548, %v544, 0.0
    %v557 = vadd.f32 %v555, %v556
    %v558 = vsel %vm548, %v545, 0.0
    %v559 = vadd.f32 %v557, %v558
    %v560 = vsel %vm548, %v546, 0.0
    %v561 = vadd.f32 %v559, %v560
    %v562 = vsel %vm548, %v547, 0.0
    %v563 = vadd.f32 %v561, %v562
    %v564 = vrot.slane %v563, 4
    %v565 = vadd.f32 %v563, %v564
    %v566 = vrot.slane %v565, 2
    %v567 = vadd.f32 %v565, %v566
    %v568 = vrot.slane %v567, 1
    %v569 = vadd.f32 %v567, %v568
    %v570 = vmul.f32 %v569, 0.015625
    %v571 = vsub.f32 %v540, %v570
    %v572 = vsub.f32 %v541, %v570
    %v573 = vsub.f32 %v542, %v570
    %v574 = vsub.f32 %v543, %v570
    %v575 = vsub.f32 %v544, %v570
    %v576 = vsub.f32 %v545, %v570
    %v577 = vsub.f32 %v546, %v570
    %v578 = vsub.f32 %v547, %v570
    %v579 = vmul.f32 %v571, %v571
    %v580 = vmul.f32 %v572, %v572
    %v581 = vmul.f32 %v573, %v573
    %v582 = vmul.f32 %v574, %v574
    %v583 = vmul.f32 %v575, %v575
    %v584 = vmul.f32 %v576, %v576
    %v585 = vmul.f32 %v577, %v577
    %v586 = vmul.f32 %v578, %v578
    %v587 = vsel %vm548, %v579, 0.0
    %v588 = vsel %vm548, %v580, 0.0
    %v589 = vadd.f32 %v587, %v588
    %v590 = vsel %vm548, %v581, 0.0
    %v591 = vadd.f32 %v589, %v590
    %v592 = vsel %vm548, %v582, 0.0
    %v593 = vadd.f32 %v591, %v592
    %v594 = vsel %vm548, %v583, 0.0
    %v595 = vadd.f32 %v593, %v594
    %v596 = vsel %vm548, %v584, 0.0
    %v597 = vadd.f32 %v595, %v596
    %v598 = vsel %vm548, %v585, 0.0
    %v599 = vadd.f32 %v597, %v598
    %v600 = vsel %vm548, %v586, 0.0
    %v601 = vadd.f32 %v599, %v600
    %v602 = vrot.slane %v601, 4
    %v603 = vadd.f32 %v601, %v602
    %v604 = vrot.slane %v603, 2
    %v605 = vadd.f32 %v603, %v604
    %v606 = vrot.slane %v605, 1
    %v607 = vadd.f32 %v605, %v606
    %v608 = vmul.f32 %v607, 0.015625
    %v609 = vadd.f32 %v608, 1e-05
    %v610 = vrsqrt.pop %v609
    %v611 = vmul.f32 %v610, %v609
    %v612 = vmul.f32 %v611, %v610
    %v613 = vmul.f32 0.5, %v612
    %v614 = vsub.f32 1.5, %v613
    %v615 = vmul.f32 %v610, %v614
    %vm616 = vweird.f32 %v609
    %vm617 = vweird.f32 %v610
    %vm618 = vmor %vm616, %vm617
    %v619 = vsel %vm618, %v610, %v615
    %v620 = vmul.f32 %v571, %v619
    %v621 = vmul.f32 %v572, %v619
    %v622 = vmul.f32 %v573, %v619
    %v623 = vmul.f32 %v574, %v619
    %v624 = vmul.f32 %v575, %v619
    %v625 = vmul.f32 %v576, %v619
    %v626 = vmul.f32 %v577, %v619
    %v627 = vmul.f32 %v578, %v619
    %v628 = vmul.f32 %v620, 0.01
    %v629 = vmul.f32 %v621, 0.01
    %v630 = vmul.f32 %v622, 0.01
    %v631 = vmul.f32 %v623, 0.01
    %v632 = vmul.f32 %v624, 0.01
    %v633 = vmul.f32 %v625, 0.01
    %v634 = vmul.f32 %v626, 0.01
    %v635 = vmul.f32 %v627, 0.01
    %v636 = vmax.f32 %v620, %v628
    %v637 = vmax.f32 %v621, %v629
    %v638 = vmax.f32 %v622, %v630
    %v639 = vmax.f32 %v623, %v631
    %v640 = vmax.f32 %v624, %v632
    %v641 = vmax.f32 %v625, %v633
    %v642 = vmax.f32 %v626, %v634
    %v643 = vmax.f32 %v627, %v635
    %v644 = vrot.slane %v636, 6
    %v645 = vrot.slane %v637, 6
    %v646 = vrot.slane %v638, 6
    %v647 = vrot.slane %v639, 6
    %v648 = vrot.slane %v640, 6
    %v649 = vrot.slane %v641, 6
    %v650 = vrot.slane %v642, 6
    %v651 = vrot.slane %v643, 6
    %v652 = vsel %vm163, %v650, %v651
    %v653 = vsel %vm163, %v649, %v650
    %v654 = vsel %vm163, %v648, %v649
    %v655 = vsel %vm163, %v647, %v648
    %v656 = vsel %vm163, %v646, %v647
    %v657 = vsel %vm163, %v645, %v646
    %v658 = vsel %vm163, %v644, %v645
    %v659 = vsel %vm163, %v651, %v644
    %v660 = vmul.f32 %v659, %v174
    %v661 = vmul.f32 %v658, %v178
    %v662 = vmul.f32 %v657, %v182
    %v663 = vmul.f32 %v656, %v186
    %v664 = vmul.f32 %v655, %v190
    %v665 = vmul.f32 %v654, %v194
    %v666 = vmul.f32 %v653, %v198
    %v667 = vmul.f32 %v652, %v202
    %v668 = vpack.c.bf16 %v660, %v660
    %v669 = vpack.c.bf16 %v661, %v661
    %v670 = vpack.c.bf16 %v662, %v662
    %v671 = vpack.c.bf16 %v663, %v663
    %v672 = vpack.c.bf16 %v664, %v664
    %v673 = vpack.c.bf16 %v665, %v665
    %v674 = vpack.c.bf16 %v666, %v666
    %v675 = vpack.c.bf16 %v667, %v667
    %v676 = vrot.slane %v636, 7
    %v677 = vrot.slane %v637, 7
    %v678 = vrot.slane %v638, 7
    %v679 = vrot.slane %v639, 7
    %v680 = vrot.slane %v640, 7
    %v681 = vrot.slane %v641, 7
    %v682 = vrot.slane %v642, 7
    %v683 = vrot.slane %v643, 7
    %v684 = vsel %vm238, %v682, %v683
    %v685 = vsel %vm238, %v681, %v682
    %v686 = vsel %vm238, %v680, %v681
    %v687 = vsel %vm238, %v679, %v680
    %v688 = vsel %vm238, %v678, %v679
    %v689 = vsel %vm238, %v677, %v678
    %v690 = vsel %vm238, %v676, %v677
    %v691 = vsel %vm238, %v683, %v676
    %v692 = vmul.f32 %v691, %v249
    %v693 = vmul.f32 %v690, %v253
    %v694 = vmul.f32 %v689, %v257
    %v695 = vmul.f32 %v688, %v261
    %v696 = vmul.f32 %v687, %v265
    %v697 = vmul.f32 %v686, %v269
    %v698 = vmul.f32 %v685, %v273
    %v699 = vmul.f32 %v684, %v277
    %v700 = vpack.c.bf16 %v692, %v692
    %v701 = vpack.c.bf16 %v693, %v693
    %v702 = vpack.c.bf16 %v694, %v694
    %v703 = vpack.c.bf16 %v695, %v695
    %v704 = vpack.c.bf16 %v696, %v696
    %v705 = vpack.c.bf16 %v697, %v697
    %v706 = vpack.c.bf16 %v698, %v698
    %v707 = vpack.c.bf16 %v699, %v699
    %v708 = vpack.c.bf16 %v636, %v636
    %v709 = vpack.c.bf16 %v637, %v637
    %v710 = vpack.c.bf16 %v638, %v638
    %v711 = vpack.c.bf16 %v639, %v639
    %v712 = vpack.c.bf16 %v640, %v640
    %v713 = vpack.c.bf16 %v641, %v641
    %v714 = vpack.c.bf16 %v642, %v642
    %v715 = vpack.c.bf16 %v643, %v643
    %v716 = vrot.slane %v636, 1
    %v717 = vrot.slane %v637, 1
    %v718 = vrot.slane %v638, 1
    %v719 = vrot.slane %v639, 1
    %v720 = vrot.slane %v640, 1
    %v721 = vrot.slane %v641, 1
    %v722 = vrot.slane %v642, 1
    %v723 = vrot.slane %v643, 1
    %v724 = vsel %vm331, %v722, %v723
    %v725 = vsel %vm331, %v721, %v722
    %v726 = vsel %vm331, %v720, %v721
    %v727 = vsel %vm331, %v719, %v720
    %v728 = vsel %vm331, %v718, %v719
    %v729 = vsel %vm331, %v717, %v718
    %v730 = vsel %vm331, %v716, %v717
    %v731 = vsel %vm331, %v723, %v716
    %v732 = vmul.f32 %v730, %v342
    %v733 = vmul.f32 %v729, %v346
    %v734 = vmul.f32 %v728, %v350
    %v735 = vmul.f32 %v727, %v354
    %v736 = vmul.f32 %v726, %v358
    %v737 = vmul.f32 %v725, %v362
    %v738 = vmul.f32 %v724, %v366
    %v739 = vmul.f32 %v731, %v370
    %v740 = vpack.c.bf16 %v732, %v732
    %v741 = vpack.c.bf16 %v733, %v733
    %v742 = vpack.c.bf16 %v734, %v734
    %v743 = vpack.c.bf16 %v735, %v735
    %v744 = vpack.c.bf16 %v736, %v736
    %v745 = vpack.c.bf16 %v737, %v737
    %v746 = vpack.c.bf16 %v738, %v738
    %v747 = vpack.c.bf16 %v739, %v739
    %v748 = vrot.slane %v636, 2
    %v749 = vrot.slane %v637, 2
    %v750 = vrot.slane %v638, 2
    %v751 = vrot.slane %v639, 2
    %v752 = vrot.slane %v640, 2
    %v753 = vrot.slane %v641, 2
    %v754 = vrot.slane %v642, 2
    %v755 = vrot.slane %v643, 2
    %v756 = vsel %vm406, %v754, %v755
    %v757 = vsel %vm406, %v753, %v754
    %v758 = vsel %vm406, %v752, %v753
    %v759 = vsel %vm406, %v751, %v752
    %v760 = vsel %vm406, %v750, %v751
    %v761 = vsel %vm406, %v749, %v750
    %v762 = vsel %vm406, %v748, %v749
    %v763 = vsel %vm406, %v755, %v748
    %v764 = vmul.f32 %v762, %v417
    %v765 = vmul.f32 %v761, %v421
    %v766 = vmul.f32 %v760, %v425
    %v767 = vmul.f32 %v759, %v429
    %v768 = vmul.f32 %v758, %v433
    %v769 = vmul.f32 %v757, %v437
    %v770 = vmul.f32 %v756, %v441
    %v771 = vmul.f32 %v763, %v445
    %v772 = vpack.c.bf16 %v764, %v764
    %v773 = vpack.c.bf16 %v765, %v765
    %v774 = vpack.c.bf16 %v766, %v766
    %v775 = vpack.c.bf16 %v767, %v767
    %v776 = vpack.c.bf16 %v768, %v768
    %v777 = vpack.c.bf16 %v769, %v769
    %v778 = vpack.c.bf16 %v770, %v770
    %v779 = vpack.c.bf16 %v771, %v771
    %v788 = vunpack.c.l.b16 %v668
    %v789 = vunpack.c.l.b16 %v669
    %v790 = vunpack.c.l.b16 %v670
    %v791 = vunpack.c.l.b16 %v671
    %v792 = vunpack.c.l.b16 %v672
    %v793 = vunpack.c.l.b16 %v673
    %v794 = vunpack.c.l.b16 %v674
    %v795 = vunpack.c.l.b16 %v675
    %v796 = vpack.c.b16 %v789, %v788
    %v797 = vpack.c.b16 %v791, %v790
    %v798 = vpack.c.b16 %v793, %v792
    %v799 = vpack.c.b16 %v795, %v794
    %v808 = vunpack.c.l.b16 %v700
    %v809 = vunpack.c.l.b16 %v701
    %v810 = vunpack.c.l.b16 %v702
    %v811 = vunpack.c.l.b16 %v703
    %v812 = vunpack.c.l.b16 %v704
    %v813 = vunpack.c.l.b16 %v705
    %v814 = vunpack.c.l.b16 %v706
    %v815 = vunpack.c.l.b16 %v707
    %v816 = vpack.c.b16 %v809, %v808
    %v817 = vpack.c.b16 %v811, %v810
    %v818 = vpack.c.b16 %v813, %v812
    %v819 = vpack.c.b16 %v815, %v814
    %820 = vrot.lane.b32.xlu0 %v816, 32
    %v821 = vpop.permute.xlu0 %820
    %822 = vrot.lane.b32.xlu0 %v817, 32
    %v823 = vpop.permute.xlu0 %822
    %824 = vrot.lane.b32.xlu0 %v818, 32
    %v825 = vpop.permute.xlu0 %824
    %826 = vrot.lane.b32.xlu0 %v819, 32
    %v827 = vpop.permute.xlu0 %826
    %v836 = vunpack.c.l.b16 %v708
    %v837 = vunpack.c.l.b16 %v709
    %v838 = vunpack.c.l.b16 %v710
    %v839 = vunpack.c.l.b16 %v711
    %v840 = vunpack.c.l.b16 %v712
    %v841 = vunpack.c.l.b16 %v713
    %v842 = vunpack.c.l.b16 %v714
    %v843 = vunpack.c.l.b16 %v715
    %v844 = vpack.c.b16 %v837, %v836
    %v845 = vpack.c.b16 %v839, %v838
    %v846 = vpack.c.b16 %v841, %v840
    %v847 = vpack.c.b16 %v843, %v842
    %848 = vrot.lane.b32.xlu0 %v844, 64
    %v849 = vpop.permute.xlu0 %848
    %850 = vrot.lane.b32.xlu0 %v845, 64
    %v851 = vpop.permute.xlu0 %850
    %852 = vrot.lane.b32.xlu0 %v846, 64
    %v853 = vpop.permute.xlu0 %852
    %854 = vrot.lane.b32.xlu0 %v847, 64
    %v855 = vpop.permute.xlu0 %854
    %v864 = vunpack.c.l.b16 %v740
    %v865 = vunpack.c.l.b16 %v741
    %v866 = vunpack.c.l.b16 %v742
    %v867 = vunpack.c.l.b16 %v743
    %v868 = vunpack.c.l.b16 %v744
    %v869 = vunpack.c.l.b16 %v745
    %v870 = vunpack.c.l.b16 %v746
    %v871 = vunpack.c.l.b16 %v747
    %v872 = vpack.c.b16 %v865, %v864
    %v873 = vpack.c.b16 %v867, %v866
    %v874 = vpack.c.b16 %v869, %v868
    %v875 = vpack.c.b16 %v871, %v870
    %876 = vrot.lane.b32.xlu0 %v872, 96
    %v877 = vpop.permute.xlu0 %876
    %878 = vrot.lane.b32.xlu0 %v873, 96
    %v879 = vpop.permute.xlu0 %878
    %880 = vrot.lane.b32.xlu0 %v874, 96
    %v881 = vpop.permute.xlu0 %880
    %882 = vrot.lane.b32.xlu0 %v875, 96
    %v883 = vpop.permute.xlu0 %882
    %v892 = vunpack.c.l.b16 %v772
    %v893 = vunpack.c.l.b16 %v773
    %v894 = vunpack.c.l.b16 %v774
    %v895 = vunpack.c.l.b16 %v775
    %v896 = vunpack.c.l.b16 %v776
    %v897 = vunpack.c.l.b16 %v777
    %v898 = vunpack.c.l.b16 %v778
    %v899 = vunpack.c.l.b16 %v779
    %v900 = vpack.c.b16 %v893, %v892
    %v901 = vpack.c.b16 %v895, %v894
    %v902 = vpack.c.b16 %v897, %v896
    %v903 = vpack.c.b16 %v899, %v898
    %v906 = vsel %vm548, %v796, %v821
    %v909 = vsel %vm548, %v797, %v823
    %v912 = vsel %vm548, %v798, %v825
    %v915 = vsel %vm548, %v799, %v827
    %vm916 = vcmask 523264
    %v918 = vsel %vm916, %v906, %v849
    %v920 = vsel %vm916, %v909, %v851
    %v922 = vsel %vm916, %v912, %v853
    %v924 = vsel %vm916, %v915, %v855
    %vm925 = vcmask 785408
    %v927 = vsel %vm925, %v918, %v877
    %v930 = vsel %vm925, %v920, %v879
    %v933 = vsel %vm925, %v922, %v881
    %v936 = vsel %vm925, %v924, %v883
    %v938 = vld [vmem:[%s3] sm:$0xf]
    %v939 = vld [vmem:[%s3 + $0x4] sm:$0xf]
    %v940 = vld [vmem:[%s3 + $0x8] sm:$0xf]
    %v941 = vld [vmem:[%s3 + $0xc] sm:$0xf]
    %v942 = vld [vmem:[%s3 + $0x10] sm:$0xf]
    %v943 = vld [vmem:[%s3 + $0x14] sm:$0xf]
    %v944 = vld [vmem:[%s3 + $0x18] sm:$0xf]
    %v945 = vld [vmem:[%s3 + $0x1c] sm:$0xf]
    %v946 = vld [vmem:[%s3 + $0x20] sm:$0xf]
    %v947 = vld [vmem:[%s3 + $0x24] sm:$0xf]
    %v948 = vld [vmem:[%s3 + $0x28] sm:$0xf]
    %v949 = vld [vmem:[%s3 + $0x2c] sm:$0xf]
    %v950 = vld [vmem:[%s3 + $0x30] sm:$0xf]
    %v951 = vld [vmem:[%s3 + $0x34] sm:$0xf]
    %v952 = vld [vmem:[%s3 + $0x38] sm:$0xf]
    %v953 = vld [vmem:[%s3 + $0x3c] sm:$0xf]
    %v954 = vld [vmem:[%s3 + $0x40] sm:$0xf]
    %v955 = vld [vmem:[%s3 + $0x44] sm:$0xf]
    %v956 = vld [vmem:[%s3 + $0x48] sm:$0xf]
    %v957 = vld [vmem:[%s3 + $0x4c] sm:$0xf]
    %v978 = vunpack.c.l.b16 %v938
    %v979 = vunpack.c.l.b16 %v939
    %v980 = vunpack.c.l.b16 %v940
    %v981 = vunpack.c.l.b16 %v941
    %v982 = vunpack.c.l.b16 %v942
    %v983 = vunpack.c.l.b16 %v943
    %v984 = vunpack.c.l.b16 %v944
    %v985 = vunpack.c.l.b16 %v945
    %v986 = vunpack.c.l.b16 %v946
    %v987 = vunpack.c.l.b16 %v947
    %v988 = vunpack.c.l.b16 %v948
    %v989 = vunpack.c.l.b16 %v949
    %v990 = vunpack.c.l.b16 %v950
    %v991 = vunpack.c.l.b16 %v951
    %v992 = vunpack.c.l.b16 %v952
    %v993 = vunpack.c.l.b16 %v953
    %v994 = vunpack.c.l.b16 %v954
    %v995 = vunpack.c.l.b16 %v955
    %v996 = vunpack.c.l.b16 %v956
    %v997 = vunpack.c.l.b16 %v957
    %v998 = vpack.c.b16 %v979, %v978
    %v999 = vpack.c.b16 %v981, %v980
    %v1000 = vpack.c.b16 %v983, %v982
    %v1001 = vpack.c.b16 %v985, %v984
    %v1002 = vpack.c.b16 %v987, %v986
    %v1003 = vpack.c.b16 %v989, %v988
    %v1004 = vpack.c.b16 %v991, %v990
    %v1005 = vpack.c.b16 %v993, %v992
    %v1006 = vpack.c.b16 %v995, %v994
    %v1007 = vpack.c.b16 %v997, %v996
    %v1019 = vsel %vm548, %v900, 0
    %v1022 = vsel %vm548, %v901, 0
    %v1025 = vsel %vm548, %v902, 0
    %v1028 = vsel %vm548, %v903, 0
    %1030 = vmatpush.bf16.msra.mxu0 %v1005
    %1031 = vmatpush.bf16.msra.mxu0 %v1004
    %1032 = vmatpush.bf16.msra.mxu0 %v1003
    %1033 = vmatpush.bf16.msra.mxu0 %v1002
    %1034 = vmatpush.bf16.msra.mxu0 %v1001
    %1035 = vmatpush.bf16.msra.mxu0 %v1000
    %1036 = vmatpush.bf16.msra.mxu0 %v999
    %1037 = vmatpush.bf16.msra.mxu0 %v998
    %1038 = vmatmul.bf16.gmra.mxu0 %v927
    %v1039 = vpop.f32.mrf.mxu0
    %v1040 = vadd.f32 0.0, %v1039
    %v1041 = vpop.f32.mrf.mxu0
    %v1042 = vadd.f32 0.0, %v1041
    %1043 = vmatmul.bf16.gmra.mxu0 %v930
    %v1044 = vpop.f32.mrf.mxu0
    %v1045 = vadd.f32 0.0, %v1044
    %v1046 = vpop.f32.mrf.mxu0
    %v1047 = vadd.f32 0.0, %v1046
    %1048 = vmatmul.bf16.gmra.mxu0 %v933
    %v1049 = vpop.f32.mrf.mxu0
    %v1050 = vadd.f32 0.0, %v1049
    %v1051 = vpop.f32.mrf.mxu0
    %v1052 = vadd.f32 0.0, %v1051
    %1053 = vmatmul.bf16.gmra.mxu0 %v936
    %v1054 = vpop.f32.mrf.mxu0
    %v1055 = vadd.f32 0.0, %v1054
    %v1056 = vpop.f32.mrf.mxu0
    %v1057 = vadd.f32 0.0, %v1056
    %1058 = vdwg.mxu0
    %1059 = vmatpush.bf16.msra.mxu0 0
    %1060 = vmatpush.bf16.msra.mxu0 0
    %1061 = vmatpush.bf16.msra.mxu0 0
    %1062 = vmatpush.bf16.msra.mxu0 0
    %1063 = vmatpush.bf16.msra.mxu0 0
    %1064 = vmatpush.bf16.msra.mxu0 0
    %1065 = vmatpush.bf16.msra.mxu0 %v1007
    %1066 = vmatpush.bf16.msra.mxu0 %v1006
    %1067 = vmatmul.bf16.gmra.mxu0 %v1019
    %v1068 = vpop.f32.mrf.mxu0
    %v1069 = vadd.f32 %v1040, %v1068
    %v1070 = vpop.f32.mrf.mxu0
    %v1071 = vadd.f32 %v1042, %v1070
    %1072 = vmatmul.bf16.gmra.mxu0 %v1022
    %v1073 = vpop.f32.mrf.mxu0
    %v1074 = vadd.f32 %v1045, %v1073
    %v1075 = vpop.f32.mrf.mxu0
    %v1076 = vadd.f32 %v1047, %v1075
    %1077 = vmatmul.bf16.gmra.mxu0 %v1025
    %v1078 = vpop.f32.mrf.mxu0
    %v1079 = vadd.f32 %v1050, %v1078
    %v1080 = vpop.f32.mrf.mxu0
    %v1081 = vadd.f32 %v1052, %v1080
    %1082 = vmatmul.bf16.gmra.mxu0 %v1028
    %v1083 = vpop.f32.mrf.mxu0
    %v1084 = vadd.f32 %v1055, %v1083
    %v1085 = vpop.f32.mrf.mxu0
    %v1086 = vadd.f32 %v1057, %v1085
    %1087 = vdwg.mxu0
    %v1088 = vsel %vm916, %v1069, 0.0
    %v1089 = vsel %vm916, %v1071, 0.0
    %v1090 = vadd.f32 %v1088, %v1089
    %v1091 = vsel %vm916, %v1074, 0.0
    %v1092 = vadd.f32 %v1090, %v1091
    %v1093 = vsel %vm916, %v1076, 0.0
    %v1094 = vadd.f32 %v1092, %v1093
    %v1095 = vsel %vm916, %v1079, 0.0
    %v1096 = vadd.f32 %v1094, %v1095
    %v1097 = vsel %vm916, %v1081, 0.0
    %v1098 = vadd.f32 %v1096, %v1097
    %v1099 = vsel %vm916, %v1084, 0.0
    %v1100 = vadd.f32 %v1098, %v1099
    %v1101 = vsel %vm916, %v1086, 0.0
    %v1102 = vadd.f32 %v1100, %v1101
    %v1103 = vrot.slane %v1102, 4
    %v1104 = vadd.f32 %v1102, %v1103
    %v1105 = vrot.slane %v1104, 2
    %v1106 = vadd.f32 %v1104, %v1105
    %v1107 = vrot.slane %v1106, 1
    %v1108 = vadd.f32 %v1106, %v1107
    %v1109 = vmul.f32 %v1108, 0.015625
    %v1110 = vsub.f32 %v1069, %v1109
    %v1111 = vsub.f32 %v1071, %v1109
    %v1112 = vsub.f32 %v1074, %v1109
    %v1113 = vsub.f32 %v1076, %v1109
    %v1114 = vsub.f32 %v1079, %v1109
    %v1115 = vsub.f32 %v1081, %v1109
    %v1116 = vsub.f32 %v1084, %v1109
    %v1117 = vsub.f32 %v1086, %v1109
    %v1118 = vmul.f32 %v1110, %v1110
    %v1119 = vmul.f32 %v1111, %v1111
    %v1120 = vmul.f32 %v1112, %v1112
    %v1121 = vmul.f32 %v1113, %v1113
    %v1122 = vmul.f32 %v1114, %v1114
    %v1123 = vmul.f32 %v1115, %v1115
    %v1124 = vmul.f32 %v1116, %v1116
    %v1125 = vmul.f32 %v1117, %v1117
    %v1126 = vsel %vm916, %v1118, 0.0
    %v1127 = vsel %vm916, %v1119, 0.0
    %v1128 = vadd.f32 %v1126, %v1127
    %v1129 = vsel %vm916, %v1120, 0.0
    %v1130 = vadd.f32 %v1128, %v1129
    %v1131 = vsel %vm916, %v1121, 0.0
    %v1132 = vadd.f32 %v1130, %v1131
    %v1133 = vsel %vm916, %v1122, 0.0
    %v1134 = vadd.f32 %v1132, %v1133
    %v1135 = vsel %vm916, %v1123, 0.0
    %v1136 = vadd.f32 %v1134, %v1135
    %v1137 = vsel %vm916, %v1124, 0.0
    %v1138 = vadd.f32 %v1136, %v1137
    %v1139 = vsel %vm916, %v1125, 0.0
    %v1140 = vadd.f32 %v1138, %v1139
    %v1141 = vrot.slane %v1140, 4
    %v1142 = vadd.f32 %v1140, %v1141
    %v1143 = vrot.slane %v1142, 2
    %v1144 = vadd.f32 %v1142, %v1143
    %v1145 = vrot.slane %v1144, 1
    %v1146 = vadd.f32 %v1144, %v1145
    %v1147 = vmul.f32 %v1146, 0.015625
    %v1148 = vadd.f32 %v1147, 1e-05
    %v1149 = vrsqrt.pop %v1148
    %v1150 = vmul.f32 %v1149, %v1148
    %v1151 = vmul.f32 %v1150, %v1149
    %v1152 = vmul.f32 0.5, %v1151
    %v1153 = vsub.f32 1.5, %v1152
    %v1154 = vmul.f32 %v1149, %v1153
    %vm1155 = vweird.f32 %v1148
    %vm1156 = vweird.f32 %v1149
    %vm1157 = vmor %vm1155, %vm1156
    %v1158 = vsel %vm1157, %v1149, %v1154
    %v1159 = vmul.f32 %v1110, %v1158
    %v1160 = vmul.f32 %v1111, %v1158
    %v1161 = vmul.f32 %v1112, %v1158
    %v1162 = vmul.f32 %v1113, %v1158
    %v1163 = vmul.f32 %v1114, %v1158
    %v1164 = vmul.f32 %v1115, %v1158
    %v1165 = vmul.f32 %v1116, %v1158
    %v1166 = vmul.f32 %v1117, %v1158
    %v1167 = vmul.f32 %v1159, 0.01
    %v1168 = vmul.f32 %v1160, 0.01
    %v1169 = vmul.f32 %v1161, 0.01
    %v1170 = vmul.f32 %v1162, 0.01
    %v1171 = vmul.f32 %v1163, 0.01
    %v1172 = vmul.f32 %v1164, 0.01
    %v1173 = vmul.f32 %v1165, 0.01
    %v1174 = vmul.f32 %v1166, 0.01
    %v1175 = vmax.f32 %v1159, %v1167
    %v1176 = vmax.f32 %v1160, %v1168
    %v1177 = vmax.f32 %v1161, %v1169
    %v1178 = vmax.f32 %v1162, %v1170
    %v1179 = vmax.f32 %v1163, %v1171
    %v1180 = vmax.f32 %v1164, %v1172
    %v1181 = vmax.f32 %v1165, %v1173
    %v1182 = vmax.f32 %v1166, %v1174
    %v1183 = vrot.slane %v1175, 7
    %v1184 = vrot.slane %v1176, 7
    %v1185 = vrot.slane %v1177, 7
    %v1186 = vrot.slane %v1178, 7
    %v1187 = vrot.slane %v1179, 7
    %v1188 = vrot.slane %v1180, 7
    %v1189 = vrot.slane %v1181, 7
    %v1190 = vrot.slane %v1182, 7
    %v1191 = vsel %vm238, %v1189, %v1190
    %v1192 = vsel %vm238, %v1188, %v1189
    %v1193 = vsel %vm238, %v1187, %v1188
    %v1194 = vsel %vm238, %v1186, %v1187
    %v1195 = vsel %vm238, %v1185, %v1186
    %v1196 = vsel %vm238, %v1184, %v1185
    %v1197 = vsel %vm238, %v1183, %v1184
    %v1198 = vsel %vm238, %v1190, %v1183
    %v1199 = vmul.f32 %v1198, %v249
    %v1200 = vmul.f32 %v1197, %v253
    %v1201 = vmul.f32 %v1196, %v257
    %v1202 = vmul.f32 %v1195, %v261
    %v1203 = vmul.f32 %v1194, %v265
    %v1204 = vmul.f32 %v1193, %v269
    %v1205 = vmul.f32 %v1192, %v273
    %v1206 = vmul.f32 %v1191, %v277
    %v1207 = vpack.c.bf16 %v1199, %v1199
    %v1208 = vpack.c.bf16 %v1200, %v1200
    %v1209 = vpack.c.bf16 %v1201, %v1201
    %v1210 = vpack.c.bf16 %v1202, %v1202
    %v1211 = vpack.c.bf16 %v1203, %v1203
    %v1212 = vpack.c.bf16 %v1204, %v1204
    %v1213 = vpack.c.bf16 %v1205, %v1205
    %v1214 = vpack.c.bf16 %v1206, %v1206
    %v1215 = vpack.c.bf16 %v1175, %v1175
    %v1216 = vpack.c.bf16 %v1176, %v1176
    %v1217 = vpack.c.bf16 %v1177, %v1177
    %v1218 = vpack.c.bf16 %v1178, %v1178
    %v1219 = vpack.c.bf16 %v1179, %v1179
    %v1220 = vpack.c.bf16 %v1180, %v1180
    %v1221 = vpack.c.bf16 %v1181, %v1181
    %v1222 = vpack.c.bf16 %v1182, %v1182
    %v1223 = vrot.slane %v1175, 1
    %v1224 = vrot.slane %v1176, 1
    %v1225 = vrot.slane %v1177, 1
    %v1226 = vrot.slane %v1178, 1
    %v1227 = vrot.slane %v1179, 1
    %v1228 = vrot.slane %v1180, 1
    %v1229 = vrot.slane %v1181, 1
    %v1230 = vrot.slane %v1182, 1
    %v1231 = vsel %vm331, %v1229, %v1230
    %v1232 = vsel %vm331, %v1228, %v1229
    %v1233 = vsel %vm331, %v1227, %v1228
    %v1234 = vsel %vm331, %v1226, %v1227
    %v1235 = vsel %vm331, %v1225, %v1226
    %v1236 = vsel %vm331, %v1224, %v1225
    %v1237 = vsel %vm331, %v1223, %v1224
    %v1238 = vsel %vm331, %v1230, %v1223
    %v1239 = vmul.f32 %v1237, %v342
    %v1240 = vmul.f32 %v1236, %v346
    %v1241 = vmul.f32 %v1235, %v350
    %v1242 = vmul.f32 %v1234, %v354
    %v1243 = vmul.f32 %v1233, %v358
    %v1244 = vmul.f32 %v1232, %v362
    %v1245 = vmul.f32 %v1231, %v366
    %v1246 = vmul.f32 %v1238, %v370
    %v1247 = vpack.c.bf16 %v1239, %v1239
    %v1248 = vpack.c.bf16 %v1240, %v1240
    %v1249 = vpack.c.bf16 %v1241, %v1241
    %v1250 = vpack.c.bf16 %v1242, %v1242
    %v1251 = vpack.c.bf16 %v1243, %v1243
    %v1252 = vpack.c.bf16 %v1244, %v1244
    %v1253 = vpack.c.bf16 %v1245, %v1245
    %v1254 = vpack.c.bf16 %v1246, %v1246
    %v1263 = vunpack.c.l.b16 %v1207
    %v1264 = vunpack.c.l.b16 %v1208
    %v1265 = vunpack.c.l.b16 %v1209
    %v1266 = vunpack.c.l.b16 %v1210
    %v1267 = vunpack.c.l.b16 %v1211
    %v1268 = vunpack.c.l.b16 %v1212
    %v1269 = vunpack.c.l.b16 %v1213
    %v1270 = vunpack.c.l.b16 %v1214
    %v1271 = vpack.c.b16 %v1264, %v1263
    %v1272 = vpack.c.b16 %v1266, %v1265
    %v1273 = vpack.c.b16 %v1268, %v1267
    %v1274 = vpack.c.b16 %v1270, %v1269
    %v1283 = vunpack.c.l.b16 %v1215
    %v1284 = vunpack.c.l.b16 %v1216
    %v1285 = vunpack.c.l.b16 %v1217
    %v1286 = vunpack.c.l.b16 %v1218
    %v1287 = vunpack.c.l.b16 %v1219
    %v1288 = vunpack.c.l.b16 %v1220
    %v1289 = vunpack.c.l.b16 %v1221
    %v1290 = vunpack.c.l.b16 %v1222
    %v1291 = vpack.c.b16 %v1284, %v1283
    %v1292 = vpack.c.b16 %v1286, %v1285
    %v1293 = vpack.c.b16 %v1288, %v1287
    %v1294 = vpack.c.b16 %v1290, %v1289
    %1295 = vrot.lane.b32.xlu0 %v1291, 64
    %v1296 = vpop.permute.xlu0 %1295
    %1297 = vrot.lane.b32.xlu0 %v1292, 64
    %v1298 = vpop.permute.xlu0 %1297
    %1299 = vrot.lane.b32.xlu0 %v1293, 64
    %v1300 = vpop.permute.xlu0 %1299
    %1301 = vrot.lane.b32.xlu0 %v1294, 64
    %v1302 = vpop.permute.xlu0 %1301
    %v1311 = vunpack.c.l.b16 %v1247
    %v1312 = vunpack.c.l.b16 %v1248
    %v1313 = vunpack.c.l.b16 %v1249
    %v1314 = vunpack.c.l.b16 %v1250
    %v1315 = vunpack.c.l.b16 %v1251
    %v1316 = vunpack.c.l.b16 %v1252
    %v1317 = vunpack.c.l.b16 %v1253
    %v1318 = vunpack.c.l.b16 %v1254
    %v1319 = vpack.c.b16 %v1312, %v1311
    %v1320 = vpack.c.b16 %v1314, %v1313
    %v1321 = vpack.c.b16 %v1316, %v1315
    %v1322 = vpack.c.b16 %v1318, %v1317
    %v1325 = vsel %vm916, %v1271, %v1296
    %v1329 = vsel %vm916, %v1272, %v1298
    %v1333 = vsel %vm916, %v1273, %v1300
    %v1337 = vsel %vm916, %v1274, %v1302
    %v1339 = vld [vmem:[%s4] sm:$0xf]
    %v1340 = vld [vmem:[%s4 + $0x4] sm:$0xf]
    %v1341 = vld [vmem:[%s4 + $0x8] sm:$0xf]
    %v1342 = vld [vmem:[%s4 + $0xc] sm:$0xf]
    %v1343 = vld [vmem:[%s4 + $0x10] sm:$0xf]
    %v1344 = vld [vmem:[%s4 + $0x14] sm:$0xf]
    %v1345 = vld [vmem:[%s4 + $0x18] sm:$0xf]
    %v1346 = vld [vmem:[%s4 + $0x1c] sm:$0xf]
    %v1347 = vld [vmem:[%s4 + $0x20] sm:$0xf]
    %v1348 = vld [vmem:[%s4 + $0x24] sm:$0xf]
    %v1349 = vld [vmem:[%s4 + $0x28] sm:$0xf]
    %v1350 = vld [vmem:[%s4 + $0x2c] sm:$0xf]
    %v1351 = vld [vmem:[%s4 + $0x30] sm:$0xf]
    %v1352 = vld [vmem:[%s4 + $0x34] sm:$0xf]
    %v1353 = vld [vmem:[%s4 + $0x38] sm:$0xf]
    %v1354 = vld [vmem:[%s4 + $0x3c] sm:$0xf]
    %v1355 = vld [vmem:[%s4 + $0x40] sm:$0xf]
    %v1356 = vld [vmem:[%s4 + $0x44] sm:$0xf]
    %v1357 = vld [vmem:[%s4 + $0x48] sm:$0xf]
    %v1358 = vld [vmem:[%s4 + $0x4c] sm:$0xf]
    %v1359 = vld [vmem:[%s4 + $0x50] sm:$0xf]
    %v1360 = vld [vmem:[%s4 + $0x54] sm:$0xf]
    %v1361 = vld [vmem:[%s4 + $0x58] sm:$0xf]
    %v1362 = vld [vmem:[%s4 + $0x5c] sm:$0xf]
    %v1387 = vunpack.c.l.b16 %v1339
    %v1388 = vunpack.c.l.b16 %v1340
    %v1389 = vunpack.c.l.b16 %v1341
    %v1390 = vunpack.c.l.b16 %v1342
    %v1391 = vunpack.c.l.b16 %v1343
    %v1392 = vunpack.c.l.b16 %v1344
    %v1393 = vunpack.c.l.b16 %v1345
    %v1394 = vunpack.c.l.b16 %v1346
    %v1395 = vunpack.c.l.b16 %v1347
    %v1396 = vunpack.c.l.b16 %v1348
    %v1397 = vunpack.c.l.b16 %v1349
    %v1398 = vunpack.c.l.b16 %v1350
    %v1399 = vunpack.c.l.b16 %v1351
    %v1400 = vunpack.c.l.b16 %v1352
    %v1401 = vunpack.c.l.b16 %v1353
    %v1402 = vunpack.c.l.b16 %v1354
    %v1403 = vunpack.c.l.b16 %v1355
    %v1404 = vunpack.c.l.b16 %v1356
    %v1405 = vunpack.c.l.b16 %v1357
    %v1406 = vunpack.c.l.b16 %v1358
    %v1407 = vunpack.c.l.b16 %v1359
    %v1408 = vunpack.c.l.b16 %v1360
    %v1409 = vunpack.c.l.b16 %v1361
    %v1410 = vunpack.c.l.b16 %v1362
    %v1411 = vpack.c.b16 %v1388, %v1387
    %v1412 = vpack.c.b16 %v1390, %v1389
    %v1413 = vpack.c.b16 %v1392, %v1391
    %v1414 = vpack.c.b16 %v1394, %v1393
    %v1415 = vpack.c.b16 %v1396, %v1395
    %v1416 = vpack.c.b16 %v1398, %v1397
    %v1417 = vpack.c.b16 %v1400, %v1399
    %v1418 = vpack.c.b16 %v1402, %v1401
    %v1419 = vpack.c.b16 %v1404, %v1403
    %v1420 = vpack.c.b16 %v1406, %v1405
    %v1421 = vpack.c.b16 %v1408, %v1407
    %v1422 = vpack.c.b16 %v1410, %v1409
    %v1436 = vsel %vm916, %v1319, 0
    %v1439 = vsel %vm916, %v1320, 0
    %v1442 = vsel %vm916, %v1321, 0
    %v1445 = vsel %vm916, %v1322, 0
    %1447 = vmatpush.bf16.msra.mxu0 %v1418
    %1448 = vmatpush.bf16.msra.mxu0 %v1417
    %1449 = vmatpush.bf16.msra.mxu0 %v1416
    %1450 = vmatpush.bf16.msra.mxu0 %v1415
    %1451 = vmatpush.bf16.msra.mxu0 %v1414
    %1452 = vmatpush.bf16.msra.mxu0 %v1413
    %1453 = vmatpush.bf16.msra.mxu0 %v1412
    %1454 = vmatpush.bf16.msra.mxu0 %v1411
    %1455 = vmatmul.bf16.gmra.mxu0 %v1325
    %v1456 = vpop.f32.mrf.mxu0
    %v1457 = vadd.f32 0.0, %v1456
    %v1458 = vpop.f32.mrf.mxu0
    %v1459 = vadd.f32 0.0, %v1458
    %1460 = vmatmul.bf16.gmra.mxu0 %v1329
    %v1461 = vpop.f32.mrf.mxu0
    %v1462 = vadd.f32 0.0, %v1461
    %v1463 = vpop.f32.mrf.mxu0
    %v1464 = vadd.f32 0.0, %v1463
    %1465 = vmatmul.bf16.gmra.mxu0 %v1333
    %v1466 = vpop.f32.mrf.mxu0
    %v1467 = vadd.f32 0.0, %v1466
    %v1468 = vpop.f32.mrf.mxu0
    %v1469 = vadd.f32 0.0, %v1468
    %1470 = vmatmul.bf16.gmra.mxu0 %v1337
    %v1471 = vpop.f32.mrf.mxu0
    %v1472 = vadd.f32 0.0, %v1471
    %v1473 = vpop.f32.mrf.mxu0
    %v1474 = vadd.f32 0.0, %v1473
    %1475 = vdwg.mxu0
    %1476 = vmatpush.bf16.msra.mxu0 0
    %1477 = vmatpush.bf16.msra.mxu0 0
    %1478 = vmatpush.bf16.msra.mxu0 0
    %1479 = vmatpush.bf16.msra.mxu0 0
    %1480 = vmatpush.bf16.msra.mxu0 %v1422
    %1481 = vmatpush.bf16.msra.mxu0 %v1421
    %1482 = vmatpush.bf16.msra.mxu0 %v1420
    %1483 = vmatpush.bf16.msra.mxu0 %v1419
    %1484 = vmatmul.bf16.gmra.mxu0 %v1436
    %v1485 = vpop.f32.mrf.mxu0
    %v1486 = vadd.f32 %v1457, %v1485
    %v1487 = vpop.f32.mrf.mxu0
    %v1488 = vadd.f32 %v1459, %v1487
    %1489 = vmatmul.bf16.gmra.mxu0 %v1439
    %v1490 = vpop.f32.mrf.mxu0
    %v1491 = vadd.f32 %v1462, %v1490
    %v1492 = vpop.f32.mrf.mxu0
    %v1493 = vadd.f32 %v1464, %v1492
    %1494 = vmatmul.bf16.gmra.mxu0 %v1442
    %v1495 = vpop.f32.mrf.mxu0
    %v1496 = vadd.f32 %v1467, %v1495
    %v1497 = vpop.f32.mrf.mxu0
    %v1498 = vadd.f32 %v1469, %v1497
    %1499 = vmatmul.bf16.gmra.mxu0 %v1445
    %v1500 = vpop.f32.mrf.mxu0
    %v1501 = vadd.f32 %v1472, %v1500
    %v1502 = vpop.f32.mrf.mxu0
    %v1503 = vadd.f32 %v1474, %v1502
    %1504 = vdwg.mxu0
    %v1505 = vadd.f32 %v1486, %v1488
    %v1506 = vadd.f32 %v1505, %v1491
    %v1507 = vadd.f32 %v1506, %v1493
    %v1508 = vadd.f32 %v1507, %v1496
    %v1509 = vadd.f32 %v1508, %v1498
    %v1510 = vadd.f32 %v1509, %v1501
    %v1511 = vadd.f32 %v1510, %v1503
    %v1512 = vrot.slane %v1511, 4
    %v1513 = vadd.f32 %v1511, %v1512
    %v1514 = vrot.slane %v1513, 2
    %v1515 = vadd.f32 %v1513, %v1514
    %v1516 = vrot.slane %v1515, 1
    %v1517 = vadd.f32 %v1515, %v1516
    %v1518 = vmul.f32 %v1517, 0.015625
    %v1519 = vsub.f32 %v1486, %v1518
    %v1520 = vsub.f32 %v1488, %v1518
    %v1521 = vsub.f32 %v1491, %v1518
    %v1522 = vsub.f32 %v1493, %v1518
    %v1523 = vsub.f32 %v1496, %v1518
    %v1524 = vsub.f32 %v1498, %v1518
    %v1525 = vsub.f32 %v1501, %v1518
    %v1526 = vsub.f32 %v1503, %v1518
    %v1527 = vmul.f32 %v1519, %v1519
    %v1528 = vmul.f32 %v1520, %v1520
    %v1529 = vmul.f32 %v1521, %v1521
    %v1530 = vmul.f32 %v1522, %v1522
    %v1531 = vmul.f32 %v1523, %v1523
    %v1532 = vmul.f32 %v1524, %v1524
    %v1533 = vmul.f32 %v1525, %v1525
    %v1534 = vmul.f32 %v1526, %v1526
    %v1535 = vadd.f32 %v1527, %v1528
    %v1536 = vadd.f32 %v1535, %v1529
    %v1537 = vadd.f32 %v1536, %v1530
    %v1538 = vadd.f32 %v1537, %v1531
    %v1539 = vadd.f32 %v1538, %v1532
    %v1540 = vadd.f32 %v1539, %v1533
    %v1541 = vadd.f32 %v1540, %v1534
    %v1542 = vrot.slane %v1541, 4
    %v1543 = vadd.f32 %v1541, %v1542
    %v1544 = vrot.slane %v1543, 2
    %v1545 = vadd.f32 %v1543, %v1544
    %v1546 = vrot.slane %v1545, 1
    %v1547 = vadd.f32 %v1545, %v1546
    %v1548 = vmul.f32 %v1547, 0.015625
    %v1549 = vadd.f32 %v1548, 1e-05
    %v1550 = vrsqrt.pop %v1549
    %v1551 = vmul.f32 %v1550, %v1549
    %v1552 = vmul.f32 %v1551, %v1550
    %v1553 = vmul.f32 0.5, %v1552
    %v1554 = vsub.f32 1.5, %v1553
    %v1555 = vmul.f32 %v1550, %v1554
    %vm1556 = vweird.f32 %v1549
    %vm1557 = vweird.f32 %v1550
    %vm1558 = vmor %vm1556, %vm1557
    %v1559 = vsel %vm1558, %v1550, %v1555
    %v1560 = vmul.f32 %v1519, %v1559
    %v1561 = vmul.f32 %v1520, %v1559
    %v1562 = vmul.f32 %v1521, %v1559
    %v1563 = vmul.f32 %v1522, %v1559
    %v1564 = vmul.f32 %v1523, %v1559
    %v1565 = vmul.f32 %v1524, %v1559
    %v1566 = vmul.f32 %v1525, %v1559
    %v1567 = vmul.f32 %v1526, %v1559
    %v1568 = vmul.f32 %v1560, 0.01
    %v1569 = vmul.f32 %v1561, 0.01
    %v1570 = vmul.f32 %v1562, 0.01
    %v1571 = vmul.f32 %v1563, 0.01
    %v1572 = vmul.f32 %v1564, 0.01
    %v1573 = vmul.f32 %v1565, 0.01
    %v1574 = vmul.f32 %v1566, 0.01
    %v1575 = vmul.f32 %v1567, 0.01
    %v1576 = vmax.f32 %v1560, %v1568
    %v1577 = vmax.f32 %v1561, %v1569
    %v1578 = vmax.f32 %v1562, %v1570
    %v1579 = vmax.f32 %v1563, %v1571
    %v1580 = vmax.f32 %v1564, %v1572
    %v1581 = vmax.f32 %v1565, %v1573
    %v1582 = vmax.f32 %v1566, %v1574
    %v1583 = vmax.f32 %v1567, %v1575
    %1584 = vst [vmem:[#allocation2] sm:$0xff] %v1576
    %1585 = vst [vmem:[#allocation2 + $0x8] sm:$0xff] %v1577
    %1586 = vst [vmem:[#allocation2 + $0x10] sm:$0xff] %v1578
    %1587 = vst [vmem:[#allocation2 + $0x18] sm:$0xff] %v1579
    %1588 = vst [vmem:[#allocation2 + $0x20] sm:$0xff] %v1580
    %1589 = vst [vmem:[#allocation2 + $0x28] sm:$0xff] %v1581
    %1590 = vst [vmem:[#allocation2 + $0x30] sm:$0xff] %v1582
    %1591 = vst [vmem:[#allocation2 + $0x38] sm:$0xff] %v1583
    // Predicated region
    $region22: #{gabor_nn1d_forward.1} parent=1 // pred_check
      _
    $region23: #{gabor_nn1d_forward.1} parent=1 // pred_check_branch
      %1593 = sbr.rel (0) target = $region25
    $region24: #{gabor_nn1d_forward.1} parent=1 // pred_region
      %1595 = vsyncadd [#allocation3], 0
      %s1596 = sshll.u32 [#allocation2], 4
      %s1597 = int_to_ptr.vmem [resolvable:$true] %s1596
      %s1598 = sshll.u32 %s5, 4
      %s1599 = int_to_ptr.hbm [resolvable:$true] %s1598
      %1604 = dma.vmem_to_hbm [thread:$0]  %s1597, 1024, %s1599, [#allocation3], 128, 128, 8
    $region25: #{gabor_nn1d_forward.1} parent=1 // pred_fallthru
      _
    // Predicated region
    $region26: #{gabor_nn1d_forward.1} parent=1 // pred_check
      _
    $region27: #{gabor_nn1d_forward.1} parent=1 // pred_check_branch
      %1606 = sbr.rel (0) target = $region29
    $region28: #{gabor_nn1d_forward.1} parent=1 // pred_region
      %1608 = dma.done [#allocation3], 1024
    $region29: #{gabor_nn1d_forward.1} parent=1 // pred_fallthru
      _
    %1609 = vsyncpa [#allocation3], 1

</llo_original>
